<compile_context>
chip_gen: v6e
topology: v6e:2x2x1
jax: 0.10.0
libtpu: 0.0.40
codegen_flags: <defaults>
</compile_context>

<pallas_src>
import jax
import jax.numpy as jnp
from jax.experimental import pallas as pl
from jax.experimental.pallas import tpu as pltpu


# --------------------------------------------------------------------------
# Kernel 1: fused projections + attention + output projection + partial stats
# --------------------------------------------------------------------------
def _attention_kernel(x_ref, wtpg_ref, btpg_ref, wout_ref, bout_ref,
                      o_ref, osum_ref, osq_ref):
    """One batch tile. x_ref: (Bb, S, Din); o_ref: (Bb, S, Dout) bf16."""
    Bb, S, Din = x_ref.shape
    dinner = wout_ref.shape[0]
    rows = Bb * S

    # Flattened (Bb*S, Din) slab so every dense projection is a full-height
    # MXU pass (M = Bb*S) instead of an M=S sliver.
    xb = x_ref[...].reshape(rows, Din).astype(jnp.bfloat16)

    # Fused theta/phi/g projection (one MXU pass). dinner**-0.5 is pre-folded
    # into the theta slice of the fused weight/bias on the host.
    # NOTE: keep dinner a multiple of 128 so the three slices stay
    # lane-tile-aligned (free views, no relayout copies).
    tpg = jnp.dot(xb, wtpg_ref[...],
                  preferred_element_type=jnp.float32) + btpg_ref[...]
    theta = tpg[:, 0 * dinner:1 * dinner].reshape(Bb, S, dinner).astype(jnp.bfloat16)
    phi = tpg[:, 1 * dinner:2 * dinner].reshape(Bb, S, dinner).astype(jnp.bfloat16)
    g = tpg[:, 2 * dinner:3 * dinner].reshape(Bb, S, dinner).astype(jnp.bfloat16)

    # scores[b, i, j] = sum_k theta[b, i, k] * phi[b, j, k]  (scale folded in)
    scores = jnp.einsum('bqd,bkd->bqk', theta, phi,
                        preferred_element_type=jnp.float32)   # (Bb, S, S) f32
    # TODO(synk): kv-block the (S, S) scores with an online softmax for long
    # sequences (S >~ 1500 on v7x / ~2500+ on v5e/v6e); monolithic tile here.

    # Softmax with deferred normalization: normalize after the PV matmul
    # (rows*dinner elements instead of rows*S), reciprocal on the EUP slot.
    m = jnp.max(scores, axis=-1, keepdims=True)
    e = jnp.exp(scores - m)
    denom = jnp.sum(e, axis=-1, keepdims=True)
    t = jnp.einsum('bqk,bkd->bqd', e.astype(jnp.bfloat16), g,
                   preferred_element_type=jnp.float32)        # (Bb, S, dinner)
    t = t * pl.reciprocal(denom, approx=True)

    # Output projection on the flattened slab.
    o = jnp.dot(t.reshape(rows, dinner).astype(jnp.bfloat16), wout_ref[...],
                preferred_element_type=jnp.float32) + bout_ref[...]  # (rows, Dout)

    o_ref[...] = o.reshape(Bb, S, -1).astype(o_ref.dtype)     # bf16 intermediate
    # One-pass partial BatchNorm statistics (f32) for this batch tile.
    # TODO(synk): E[x^2]-E[x]^2 in f32 can cancel if |mean| >> std; switch to
    # centered/compensated accumulation if activations drift.
    osum_ref[...] = jnp.sum(o, axis=0, keepdims=True)
    osq_ref[...] = jnp.sum(o * o, axis=0, keepdims=True)


# --------------------------------------------------------------------------
# Kernel 2: folded BatchNorm affine + alpha * residual (HBM-bound, lane-dense)
# --------------------------------------------------------------------------
def _bn_residual_kernel(o_ref, x_ref, scale_ref, shift_ref, alpha_ref, out_ref):
    o = o_ref[...].astype(jnp.float32)
    out_ref[...] = (o * scale_ref[...] + shift_ref[...]
                    + alpha_ref[0] * x_ref[...]).astype(out_ref.dtype)


# --------------------------------------------------------------------------
# Tiling / config helpers
# --------------------------------------------------------------------------
def _pick_batch_tile(B, S, target_rows=256):
    """Batch tile Bb for kernel 1: smallest divisor of B whose flattened row
    count Bb*S reaches `target_rows` (MXU fill), preferring to keep a grid of
    >= 2 steps (v7x megacore / pipelining). Tiny problems use a single tile."""
    divs = [d for d in range(1, B + 1) if B % d == 0]
    multi = [d for d in divs if B // d >= 2]
    for pool in (multi, divs):
        for d in pool:
            if d * S >= target_rows:
                return d
    if multi and multi[-1] * S >= target_rows // 2:
        return multi[-1]
    return divs[-1]


def _row_tile(n_rows, max_rows=1024):
    """Sublane-aligned row tile for kernel 2; the last (partial) grid tile is
    masked by Pallas, so no whole-array fallback is ever taken."""
    return n_rows if n_rows <= max_rows else max_rows


def _vmem_limit_bytes():
    """~3/4 of physical VMEM, capped at 64 MiB (v5e/v6e: 64 MiB, v7x: 48 MiB)."""
    try:
        cap = int(pltpu.get_tpu_info().vmem_capacity_bytes)
    except Exception:
        cap = 64 * 1024 * 1024  # conservative (v7x-sized) fallback
    return int(min(64 * 1024 * 1024, (cap * 3) // 4))


# --------------------------------------------------------------------------
# Wrapper
# --------------------------------------------------------------------------
def nonlocal_block(x, params):
    """NonLocalBlock forward (training-mode BatchNorm statistics)."""
    B, S, Din = x.shape
    Dinner = params['wt'].shape[0]
    Dout = params['wo'].shape[0]
    assert Din == Dout, "residual `out + alpha * x` requires dim_in == dim_out"

    # Host-side (one-off) weight prep: fuse theta/phi/g, fold dinner**-0.5
    # into the theta part, pre-transpose for `x @ W`, cast weights to bf16.
    scale = float(Dinner) ** -0.5
    w_tpg_t = jnp.concatenate(
        [params['wt'] * scale, params['wp'], params['wg']], axis=0
    ).T.astype(jnp.bfloat16)                                    # (Din, 3*Dinner)
    b_tpg = jnp.concatenate(
        [params['bt'] * scale, params['bp'], params['bg']], axis=1)  # (1, 3*Di)
    w_out_t = params['wo'].T.astype(jnp.bfloat16)               # (Dinner, Dout)
    b_out = params['bo']                                        # (1, Dout)
    Dinner3 = 3 * Dinner

    mosaic = pltpu.CompilerParams(
        dimension_semantics=("parallel",),
        vmem_limit_bytes=_vmem_limit_bytes())

    Bb = _pick_batch_tile(B, S)
    n_tiles = B // Bb

    # TODO(synk): mark the constant weight/bias in_specs pipeline_mode=
    # pl.Buffered(1) for VMEM headroom once Din/Dinner scale up (negligible
    # at Din=256, so left double-buffered here).
    o, osum, osq = pl.pallas_call(
        _attention_kernel,
        grid=(n_tiles,),
        in_specs=[
            pl.BlockSpec((Bb, S, Din), lambda b: (b, 0, 0)),      # x batch tile
            pl.BlockSpec((Din, Dinner3), lambda b: (0, 0)),       # fused W^T
            pl.BlockSpec((1, Dinner3), lambda b: (0, 0)),         # fused bias
            pl.BlockSpec((Dinner, Dout), lambda b: (0, 0)),       # out W^T
            pl.BlockSpec((1, Dout), lambda b: (0, 0)),            # out bias
        ],
        out_specs=[
            pl.BlockSpec((Bb, S, Dout), lambda b: (b, 0, 0)),     # o (bf16)
            pl.BlockSpec((None, 1, Dout), lambda b: (b, 0, 0)),   # sum(o)
            pl.BlockSpec((None, 1, Dout), lambda b: (b, 0, 0)),   # sum(o*o)
        ],
        out_shape=[
            jax.ShapeDtypeStruct((B, S, Dout), jnp.bfloat16),
            jax.ShapeDtypeStruct((n_tiles, 1, Dout), jnp.float32),
            jax.ShapeDtypeStruct((n_tiles, 1, Dout), jnp.float32),
        ],
        compiler_params=mosaic,
    )(x, w_tpg_t, b_tpg, w_out_t, b_out)

    # Tiny cross-tile reduction + fold BN into a single scale/shift (training-
    # mode batch statistics).
    n_rows = B * S
    mean = jnp.sum(osum, axis=0) / n_rows                  # (1, Dout)
    var = jnp.sum(osq, axis=0) / n_rows - mean * mean      # biased variance
    rstd = jax.lax.rsqrt(var + jnp.float32(1e-5))
    bn_scale = params['gamma'] * rstd                      # (1, Dout)
    bn_shift = params['beta'] - mean * bn_scale            # (1, Dout)
    # TODO(synk): BatchNorm running-stat update / eval mode not implemented.

    tr = _row_tile(n_rows)
    out2 = pl.pallas_call(
        _bn_residual_kernel,
        grid=(pl.cdiv(n_rows, tr),),
        in_specs=[
            pl.BlockSpec((tr, Dout), lambda i: (i, 0)),           # o rows (bf16)
            pl.BlockSpec((tr, Din), lambda i: (i, 0)),            # residual x
            pl.BlockSpec((1, Dout), lambda i: (0, 0)),            # BN scale
            pl.BlockSpec((1, Dout), lambda i: (0, 0)),            # BN shift
            pl.BlockSpec(memory_space=pltpu.MemorySpace.SMEM),    # alpha scalar
        ],
        out_specs=pl.BlockSpec((tr, Dout), lambda i: (i, 0)),
        out_shape=jax.ShapeDtypeStruct((n_rows, Dout), jnp.float32),
        compiler_params=mosaic,
    )(o.reshape(n_rows, Dout), x.reshape(n_rows, Din),
      bn_scale, bn_shift, params['alpha'])

    return out2.reshape(B, S, Dout)


# --------------------------------------------------------------------------
# Params / reference / test
# --------------------------------------------------------------------------
def init_params(key, dim_in, dim_out, dim_inner):
    ks = jax.random.split(key, 8)

    def lin(kw, kb, fan_out, fan_in):
        bound = 1.0 / float(fan_in) ** 0.5
        w = jax.random.uniform(kw, (fan_out, fan_in), jnp.float32, -bound, bound)
        b = jax.random.uniform(kb, (1, fan_out), jnp.float32, -bound, bound)
        return w, b

    wt, bt = lin(ks[0], ks[1], dim_inner, dim_in)
    wp, bp = lin(ks[2], ks[3], dim_inner, dim_in)
    wg, bg = lin(ks[4], ks[5], dim_inner, dim_in)
    wo, bo = lin(ks[6], ks[7], dim_out, dim_inner)
    return dict(
        wt=wt, bt=bt, wp=wp, bp=bp, wg=wg, bg=bg, wo=wo, bo=bo,
        gamma=jnp.ones((1, dim_out), jnp.float32),   # BatchNorm1d weight
        beta=jnp.zeros((1, dim_out), jnp.float32),   # BatchNorm1d bias
        alpha=jnp.zeros((1,), jnp.float32),          # nn.Parameter([0.0])
    )


def reference(x, p):
    """Pure-JAX f32 reference mirroring the PyTorch forward (training BN)."""
    B, S, Din = x.shape
    xf = x.reshape(B * S, Din)
    theta = (xf @ p['wt'].T + p['bt']).reshape(B, S, -1)
    phi = (xf @ p['wp'].T + p['bp']).reshape(B, S, -1)
    g = (xf @ p['wg'].T + p['bg']).reshape(B, S, -1)
    dinner = theta.shape[-1]
    scores = jnp.einsum('bik,bjk->bij', theta, phi) * (dinner ** -0.5)
    pr = jax.nn.softmax(scores, axis=-1)
    t = jnp.einsum('bij,bjk->bik', pr, g).reshape(B * S, dinner)
    o = t @ p['wo'].T + p['bo']
    mean = jnp.mean(o, axis=0, keepdims=True)
    var = jnp.mean((o - mean) ** 2, axis=0, keepdims=True)
    o = (o - mean) / jnp.sqrt(var + 1e-5) * p['gamma'] + p['beta']
    return o.reshape(B, S, -1) + p['alpha'][0] * x


if __name__ == "__main__":
    B, S = 4, 16
    dim_in = dim_out = 256      # lane-dense feature dims (multiples of 128)
    dim_inner = 128             # multiple of 128: keeps fused slices lane-aligned

    key = jax.random.PRNGKey(0)
    kx, kp = jax.random.split(key)
    x = jax.random.normal(kx, (B, S, dim_in), jnp.float32)
    params = init_params(kp, dim_in, dim_out, dim_inner)
    # Exercise the residual path (the module initializes alpha to 0).
    params['alpha'] = jnp.full((1,), 0.5, jnp.float32)

    fwd = jax.jit(nonlocal_block)
    out = jax.block_until_ready(fwd(x, params))

    ref = reference(x, params)
    assert out.shape == (B, S, dim_out)
    err = float(jnp.max(jnp.abs(out - ref)))
    # bf16 MXU operands + bf16 intermediate o (f32 accumulation/stats) vs an
    # all-f32 reference.
    assert err < 1e-1, f"mismatch vs reference: max abs err {err}"
    print("KERNEL_OK")
</pallas_src>

<mosaic_0001>
module attributes {stable_mosaic.version = 11 : i64} {
  func.func @_bn_residual_kernel(%arg0: i32, %arg1: memref<64x256xbf16, #tpu.memory_space<vmem>>, %arg2: memref<64x256xf32, #tpu.memory_space<vmem>>, %arg3: memref<1x256xf32, #tpu.memory_space<vmem>>, %arg4: memref<1x256xf32, #tpu.memory_space<vmem>>, %arg5: memref<1xf32, #tpu.memory_space<smem>>, %arg6: memref<64x256xf32, #tpu.memory_space<vmem>>) attributes {dimension_semantics = [#tpu.dimension_semantics<parallel>], iteration_bounds = array<i64: 1>, scalar_prefetch = 0 : i64, scratch_operands = 0 : i64, tpu.core_type = #tpu.core_type<tc>, window_params = [{transform_indices = @transform_0, window_bounds = array<i64: 64, 256>}, {transform_indices = @transform_1, window_bounds = array<i64: 64, 256>}, {pipeline_mode = #tpu.pipeline_mode<synchronous>, transform_indices = @transform_2, window_bounds = array<i64: 1, 256>}, {pipeline_mode = #tpu.pipeline_mode<synchronous>, transform_indices = @transform_3, window_bounds = array<i64: 1, 256>}, {transform_indices = @transform_4, window_bounds = array<i64: 1>}, {transform_indices = @transform_5, window_bounds = array<i64: 64, 256>}]} {
    %c0 = arith.constant 0 : index
    %c0_0 = arith.constant 0 : index
    %0 = vector.load %arg1[%c0, %c0_0] : memref<64x256xbf16, #tpu.memory_space<vmem>>, vector<64x256xbf16>
    %1 = arith.extf %0 : vector<64x256xbf16> to vector<64x256xf32>
    %c0_1 = arith.constant 0 : index
    %c0_2 = arith.constant 0 : index
    %2 = vector.load %arg3[%c0_1, %c0_2] : memref<1x256xf32, #tpu.memory_space<vmem>>, vector<1x256xf32>
    %3 = vector.broadcast %2 : vector<1x256xf32> to vector<64x256xf32>
    %4 = arith.mulf %1, %3 : vector<64x256xf32>
    %c0_3 = arith.constant 0 : index
    %c0_4 = arith.constant 0 : index
    %5 = vector.load %arg4[%c0_3, %c0_4] : memref<1x256xf32, #tpu.memory_space<vmem>>, vector<1x256xf32>
    %6 = vector.broadcast %5 : vector<1x256xf32> to vector<64x256xf32>
    %7 = arith.addf %4, %6 : vector<64x256xf32>
    %c0_5 = arith.constant 0 : index
    %8 = memref.load %arg5[%c0_5] : memref<1xf32, #tpu.memory_space<smem>>
    %c0_6 = arith.constant 0 : index
    %c0_7 = arith.constant 0 : index
    %9 = vector.load %arg2[%c0_6, %c0_7] : memref<64x256xf32, #tpu.memory_space<vmem>>, vector<64x256xf32>
    %10 = vector.broadcast %8 : f32 to vector<64x256xf32>
    %11 = arith.mulf %10, %9 : vector<64x256xf32>
    %12 = arith.addf %7, %11 : vector<64x256xf32>
    %c0_8 = arith.constant 0 : index
    %c0_9 = arith.constant 0 : index
    %13 = vector.load %arg6[%c0_8, %c0_9] : memref<64x256xf32, #tpu.memory_space<vmem>>, vector<64x256xf32>
    tpu.vector_store %arg6[%c0_8, %c0_9], %12 {strides = array<i32>} : memref<64x256xf32, #tpu.memory_space<vmem>>, vector<64x256xf32>,
    return
  }
  func.func @transform_0(%arg0: i32) -> (i32, i32) {
    %c0_i32 = arith.constant 0 : i32
    %c0_i32_0 = arith.constant 0 : i32
    return %arg0, %c0_i32 : i32, i32
  }
  func.func @transform_1(%arg0: i32) -> (i32, i32) {
    %c0_i32 = arith.constant 0 : i32
    %c0_i32_0 = arith.constant 0 : i32
    return %arg0, %c0_i32 : i32, i32
  }
  func.func @transform_2(%arg0: i32) -> (i32, i32) {
    %c0_i32 = arith.constant 0 : i32
    %c0_i32_0 = arith.constant 0 : i32
    %c0_i32_1 = arith.constant 0 : i32
    return %c0_i32, %c0_i32_0 : i32, i32
  }
  func.func @transform_3(%arg0: i32) -> (i32, i32) {
    %c0_i32 = arith.constant 0 : i32
    %c0_i32_0 = arith.constant 0 : i32
    %c0_i32_1 = arith.constant 0 : i32
    return %c0_i32, %c0_i32_0 : i32, i32
  }
  func.func @transform_4(%arg0: i32) -> i32 {
    %c0_i32 = arith.constant 0 : i32
    %c0_i32_0 = arith.constant 0 : i32
    return %c0_i32 : i32
  }
  func.func @transform_5(%arg0: i32) -> (i32, i32) {
    %c0_i32 = arith.constant 0 : i32
    %c0_i32_0 = arith.constant 0 : i32
    return %arg0, %c0_i32 : i32, i32
  }
}

module attributes {stable_mosaic.version = 11 : i64} {
  func.func @_attention_kernel(%arg0: i32, %arg1: memref<4x16x256xf32, #tpu.memory_space<vmem>>, %arg2: memref<256x384xbf16, #tpu.memory_space<vmem>>, %arg3: memref<1x384xf32, #tpu.memory_space<vmem>>, %arg4: memref<128x256xbf16, #tpu.memory_space<vmem>>, %arg5: memref<1x256xf32, #tpu.memory_space<vmem>>, %arg6: memref<4x16x256xbf16, #tpu.memory_space<vmem>>, %arg7: memref<1x1x256xf32, #tpu.memory_space<vmem>>, %arg8: memref<1x1x256xf32, #tpu.memory_space<vmem>>) attributes {dimension_semantics = [#tpu.dimension_semantics<parallel>], iteration_bounds = array<i64: 1>, scalar_prefetch = 0 : i64, scratch_operands = 0 : i64, tpu.core_type = #tpu.core_type<tc>, window_params = [{transform_indices = @transform_0, window_bounds = array<i64: 4, 16, 256>}, {pipeline_mode = #tpu.pipeline_mode<synchronous>, transform_indices = @transform_1, window_bounds = array<i64: 256, 384>}, {pipeline_mode = #tpu.pipeline_mode<synchronous>, transform_indices = @transform_2, window_bounds = array<i64: 1, 384>}, {pipeline_mode = #tpu.pipeline_mode<synchronous>, transform_indices = @transform_3, window_bounds = array<i64: 128, 256>}, {pipeline_mode = #tpu.pipeline_mode<synchronous>, transform_indices = @transform_4, window_bounds = array<i64: 1, 256>}, {transform_indices = @transform_5, window_bounds = array<i64: 4, 16, 256>}, {transform_indices = @transform_6, window_bounds = array<i64: 1, 1, 256>}, {transform_indices = @transform_7, window_bounds = array<i64: 1, 1, 256>}]} {
    %c0 = arith.constant 0 : index
    %c0_0 = arith.constant 0 : index
    %c0_1 = arith.constant 0 : index
    %0 = vector.load %arg1[%c0, %c0_0, %c0_1] : memref<4x16x256xf32, #tpu.memory_space<vmem>>, vector<4x16x256xf32>
    %1 = vector.shape_cast %0 : vector<4x16x256xf32> to vector<64x256xf32>
    %2 = arith.truncf %1 : vector<64x256xf32> to vector<64x256xbf16>
    %c0_2 = arith.constant 0 : index
    %c0_3 = arith.constant 0 : index
    %3 = vector.load %arg2[%c0_2, %c0_3] : memref<256x384xbf16, #tpu.memory_space<vmem>>, vector<256x384xbf16>
    %cst = arith.constant dense<0.000000e+00> : vector<64x384xf32>
    %4 = tpu.matmul %2, %3, %cst {dimension_numbers = #tpu.dot_dimension_numbers<[1], [0], [0], [1], [0, 0, 1, 1], [], []>} : vector<64x256xbf16>, vector<256x384xbf16>, vector<64x384xf32> -> vector<64x384xf32>
    %c0_4 = arith.constant 0 : index
    %c0_5 = arith.constant 0 : index
    %5 = vector.load %arg3[%c0_4, %c0_5] : memref<1x384xf32, #tpu.memory_space<vmem>>, vector<1x384xf32>
    %6 = vector.broadcast %5 : vector<1x384xf32> to vector<64x384xf32>
    %7 = arith.addf %4, %6 : vector<64x384xf32>
    %8 = vector.extract_strided_slice %7 {offsets = [0, 0], sizes = [64, 128], strides = [1, 1]} : vector<64x384xf32> to vector<64x128xf32>
    %9 = vector.shape_cast %8 : vector<64x128xf32> to vector<4x16x128xf32>
    %10 = arith.truncf %9 : vector<4x16x128xf32> to vector<4x16x128xbf16>
    %11 = vector.extract_strided_slice %7 {offsets = [0, 128], sizes = [64, 128], strides = [1, 1]} : vector<64x384xf32> to vector<64x128xf32>
    %12 = vector.shape_cast %11 : vector<64x128xf32> to vector<4x16x128xf32>
    %13 = arith.truncf %12 : vector<4x16x128xf32> to vector<4x16x128xbf16>
    %14 = vector.extract_strided_slice %7 {offsets = [0, 256], sizes = [64, 128], strides = [1, 1]} : vector<64x384xf32> to vector<64x128xf32>
    %15 = vector.shape_cast %14 : vector<64x128xf32> to vector<4x16x128xf32>
    %16 = arith.truncf %15 : vector<4x16x128xf32> to vector<4x16x128xbf16>
    "tpu.trace_start"() <{level = 10 : i32, message = "bqd,bkd->bqk"}> : () -> ()
    %cst_6 = arith.constant dense<0.000000e+00> : vector<4x16x16xf32>
    %17 = tpu.matmul %10, %13, %cst_6 {dimension_numbers = #tpu.dot_dimension_numbers<[2], [2], [1], [1], [0, 0, 0, 1, 1, 1], [0], [0]>} : vector<4x16x128xbf16>, vector<4x16x128xbf16>, vector<4x16x16xf32> -> vector<4x16x16xf32>
    "tpu.trace_stop"() : () -> ()
    %cst_7 = arith.constant dense<0xFF800000> : vector<4x16xf32>
    %18 = vector.multi_reduction <maximumf>, %17, %cst_7 [2] : vector<4x16x16xf32> to vector<4x16xf32>
    %19 = vector.shape_cast %18 : vector<4x16xf32> to vector<4x16x1xf32>
    %20 = vector.broadcast %19 : vector<4x16x1xf32> to vector<4x16x16xf32>
    %21 = arith.subf %17, %20 : vector<4x16x16xf32>
    %22 = math.exp %21 : vector<4x16x16xf32>
    %cst_8 = arith.constant dense<0.000000e+00> : vector<4x16xf32>
    %23 = vector.multi_reduction <add>, %22, %cst_8 [2] : vector<4x16x16xf32> to vector<4x16xf32>
    %24 = vector.shape_cast %23 : vector<4x16xf32> to vector<4x16x1xf32>
    %25 = arith.truncf %22 : vector<4x16x16xf32> to vector<4x16x16xbf16>
    "tpu.trace_start"() <{level = 10 : i32, message = "bqk,bkd->bqd"}> : () -> ()
    %cst_9 = arith.constant dense<0.000000e+00> : vector<4x16x128xf32>
    %26 = tpu.matmul %25, %16, %cst_9 {dimension_numbers = #tpu.dot_dimension_numbers<[2], [1], [1], [2], [0, 0, 0, 1, 1, 2], [0], [0]>} : vector<4x16x16xbf16>, vector<4x16x128xbf16>, vector<4x16x128xf32> -> vector<4x16x128xf32>
    "tpu.trace_stop"() : () -> ()
    %27 = tpu.reciprocal %24 {approx = true} : vector<4x16x1xf32> -> vector<4x16x1xf32>
    %28 = vector.broadcast %27 : vector<4x16x1xf32> to vector<4x16x128xf32>
    %29 = arith.mulf %26, %28 : vector<4x16x128xf32>
    %30 = vector.shape_cast %29 : vector<4x16x128xf32> to vector<64x128xf32>
    %31 = arith.truncf %30 : vector<64x128xf32> to vector<64x128xbf16>
    %c0_10 = arith.constant 0 : index
    %c0_11 = arith.constant 0 : index
    %32 = vector.load %arg4[%c0_10, %c0_11] : memref<128x256xbf16, #tpu.memory_space<vmem>>, vector<128x256xbf16>
    %cst_12 = arith.constant dense<0.000000e+00> : vector<64x256xf32>
    %33 = tpu.matmul %31, %32, %cst_12 {dimension_numbers = #tpu.dot_dimension_numbers<[1], [0], [0], [1], [0, 0, 1, 1], [], []>} : vector<64x128xbf16>, vector<128x256xbf16>, vector<64x256xf32> -> vector<64x256xf32>
    %c0_13 = arith.constant 0 : index
    %c0_14 = arith.constant 0 : index
    %34 = vector.load %arg5[%c0_13, %c0_14] : memref<1x256xf32, #tpu.memory_space<vmem>>, vector<1x256xf32>
    %35 = vector.broadcast %34 : vector<1x256xf32> to vector<64x256xf32>
    %36 = arith.addf %33, %35 : vector<64x256xf32>
    %37 = vector.shape_cast %36 : vector<64x256xf32> to vector<4x16x256xf32>
    %38 = arith.truncf %37 : vector<4x16x256xf32> to vector<4x16x256xbf16>
    %c0_15 = arith.constant 0 : index
    %c0_16 = arith.constant 0 : index
    %c0_17 = arith.constant 0 : index
    %39 = vector.load %arg6[%c0_15, %c0_16, %c0_17] : memref<4x16x256xbf16, #tpu.memory_space<vmem>>, vector<4x16x256xbf16>
    tpu.vector_store %arg6[%c0_15, %c0_16, %c0_17], %38 {strides = array<i32>} : memref<4x16x256xbf16, #tpu.memory_space<vmem>>, vector<4x16x256xbf16>,
    %cst_18 = arith.constant dense<0.000000e+00> : vector<256xf32>
    %40 = vector.multi_reduction <add>, %36, %cst_18 [0] : vector<64x256xf32> to vector<256xf32>
    %41 = vector.shape_cast %40 : vector<256xf32> to vector<1x256xf32>
    %c0_19 = arith.constant 0 : index
    %c0_20 = arith.constant 0 : index
    %c0_21 = arith.constant 0 : index
    %42 = vector.load %arg7[%c0_19, %c0_20, %c0_21] : memref<1x1x256xf32, #tpu.memory_space<vmem>>, vector<1x1x256xf32>
    %43 = vector.shape_cast %42 : vector<1x1x256xf32> to vector<1x256xf32>
    %44 = vector.shape_cast %41 : vector<1x256xf32> to vector<1x1x256xf32>
    tpu.vector_store %arg7[%c0_19, %c0_20, %c0_21], %44 {strides = array<i32>} : memref<1x1x256xf32, #tpu.memory_space<vmem>>, vector<1x1x256xf32>,
    %45 = arith.mulf %36, %36 : vector<64x256xf32>
    %cst_22 = arith.constant dense<0.000000e+00> : vector<256xf32>
    %46 = vector.multi_reduction <add>, %45, %cst_22 [0] : vector<64x256xf32> to vector<256xf32>
    %47 = vector.shape_cast %46 : vector<256xf32> to vector<1x256xf32>
    %c0_23 = arith.constant 0 : index
    %c0_24 = arith.constant 0 : index
    %c0_25 = arith.constant 0 : index
    %48 = vector.load %arg8[%c0_23, %c0_24, %c0_25] : memref<1x1x256xf32, #tpu.memory_space<vmem>>, vector<1x1x256xf32>
    %49 = vector.shape_cast %48 : vector<1x1x256xf32> to vector<1x256xf32>
    %50 = vector.shape_cast %47 : vector<1x256xf32> to vector<1x1x256xf32>
    tpu.vector_store %arg8[%c0_23, %c0_24, %c0_25], %50 {strides = array<i32>} : memref<1x1x256xf32, #tpu.memory_space<vmem>>, vector<1x1x256xf32>,
    return
  }
  func.func @transform_0(%arg0: i32) -> (i32, i32, i32) {
    %c0_i32 = arith.constant 0 : i32
    %c0_i32_0 = arith.constant 0 : i32
    %c0_i32_1 = arith.constant 0 : i32
    return %arg0, %c0_i32, %c0_i32_0 : i32, i32, i32
  }
  func.func @transform_1(%arg0: i32) -> (i32, i32) {
    %c0_i32 = arith.constant 0 : i32
    %c0_i32_0 = arith.constant 0 : i32
    %c0_i32_1 = arith.constant 0 : i32
    return %c0_i32, %c0_i32_0 : i32, i32
  }
  func.func @transform_2(%arg0: i32) -> (i32, i32) {
    %c0_i32 = arith.constant 0 : i32
    %c0_i32_0 = arith.constant 0 : i32
    %c0_i32_1 = arith.constant 0 : i32
    return %c0_i32, %c0_i32_0 : i32, i32
  }
  func.func @transform_3(%arg0: i32) -> (i32, i32) {
    %c0_i32 = arith.constant 0 : i32
    %c0_i32_0 = arith.constant 0 : i32
    %c0_i32_1 = arith.constant 0 : i32
    return %c0_i32, %c0_i32_0 : i32, i32
  }
  func.func @transform_4(%arg0: i32) -> (i32, i32) {
    %c0_i32 = arith.constant 0 : i32
    %c0_i32_0 = arith.constant 0 : i32
    %c0_i32_1 = arith.constant 0 : i32
    return %c0_i32, %c0_i32_0 : i32, i32
  }
  func.func @transform_5(%arg0: i32) -> (i32, i32, i32) {
    %c0_i32 = arith.constant 0 : i32
    %c0_i32_0 = arith.constant 0 : i32
    %c0_i32_1 = arith.constant 0 : i32
    return %arg0, %c0_i32, %c0_i32_0 : i32, i32, i32
  }
  func.func @transform_6(%arg0: i32) -> (i32, i32, i32) {
    %c0_i32 = arith.constant 0 : i32
    %c0_i32_0 = arith.constant 0 : i32
    %c0_i32_1 = arith.constant 0 : i32
    return %arg0, %c0_i32, %c0_i32_0 : i32, i32, i32
  }
  func.func @transform_7(%arg0: i32) -> (i32, i32, i32) {
    %c0_i32 = arith.constant 0 : i32
    %c0_i32_0 = arith.constant 0 : i32
    %c0_i32_1 = arith.constant 0 : i32
    return %arg0, %c0_i32, %c0_i32_0 : i32, i32, i32
  }
}

</mosaic_0001>

<llo_original>
// kernel: nonlocal_block.3
$region0: #{nonlocal_block.3}
  #allocation0 [shape = 'u32[]', space=smem, size = 0x4, offset = 0x4, fixed_abs, tag = 'smem constant byte address 0x4 - core index']
  #allocation1 [shape = 'u32[144,128]{1,0:T(1,128)}', space=vmem, size = 0x12000, scoped, tag = 'internal scratch']
  #allocation2 [shape = 'f32[1]{0:T(128)S(6)}', space=smem, size = 0x200, scoped, tag = 'scoped memory for nonlocal_block.3']
  %s0 = inlined_call_operand.vmem [shape: bf16[64,256], index: 0, kind: input, shape index: {}]
  %s1 = inlined_call_operand.vmem [shape: f32[64,256], index: 1, kind: input, shape index: {}]
  %s2 = inlined_call_operand.vmem [shape: f32[1,256], index: 2, kind: input, shape index: {}]
  %s3 = inlined_call_operand.vmem [shape: f32[1,256], index: 3, kind: input, shape index: {}]
  %s4 = inlined_call_operand.<no memory space> [shape: f32[1], index: 4, kind: input, shape index: {}]
  %s5 = inlined_call_operand.hbm [shape: f32[64,256], index: 5, kind: output, shape index: {}]
  %s6 = sld [smem:[#allocation0]]
  $region30: #{nonlocal_block.3} parent=0
    _
  %s8 = ssub.s32 1, %s6
  %s9 = scalar_select 0, %s8, %s6
  %10 = sst [smem:[#allocation2]] %s4
  $region1: #{nonlocal_block.3} parent=0
    #allocation3 [shape = 'u8[65536]{0}', space=vmem, size = 0x10000, scoped, tag = 'output window, operand 0, single buffered']
    #allocation4 [shape = 's32[1]{0}', space=sflag, size = 0x4, scoped, tag = 'scoped memory for nonlocal_block.3']
    %11 = vsyncpa [#allocation4], 0
    // Predicated region
    $region2: #{nonlocal_block.3} parent=1 // pred_check
      _
    $region3: #{nonlocal_block.3} parent=1 // pred_check_branch
      %13 = sbr.rel (0) target = $region5
    $region4: #{nonlocal_block.3} parent=1 // pred_region
      _
    $region5: #{nonlocal_block.3} parent=1 // pred_fallthru
      _
    // Predicated region
    $region6: #{nonlocal_block.3} parent=1 // pred_check
      _
    $region7: #{nonlocal_block.3} parent=1 // pred_check_branch
      %15 = sbr.rel (0) target = $region9
    $region8: #{nonlocal_block.3} parent=1 // pred_region
      _
    $region9: #{nonlocal_block.3} parent=1 // pred_fallthru
      _
    // Predicated region
    $region10: #{nonlocal_block.3} parent=1 // pred_check
      _
    $region11: #{nonlocal_block.3} parent=1 // pred_check_branch
      %17 = sbr.rel (0) target = $region13
    $region12: #{nonlocal_block.3} parent=1 // pred_region
      _
    $region13: #{nonlocal_block.3} parent=1 // pred_fallthru
      _
    // Predicated region
    $region14: #{nonlocal_block.3} parent=1 // pred_check
      _
    $region15: #{nonlocal_block.3} parent=1 // pred_check_branch
      %19 = sbr.rel (0) target = $region17
    $region16: #{nonlocal_block.3} parent=1 // pred_region
      _
    $region17: #{nonlocal_block.3} parent=1 // pred_fallthru
      _
    // Predicated region
    $region18: #{nonlocal_block.3} parent=1 // pred_check
      _
    $region19: #{nonlocal_block.3} parent=1 // pred_check_branch
      %21 = sbr.rel (0) target = $region21
    $region20: #{nonlocal_block.3} parent=1 // pred_region
      _
    $region21: #{nonlocal_block.3} parent=1 // pred_fallthru
      _
    %v22 = vld [vmem:[%s0] sm:$0xff]
    %v23 = vld [vmem:[%s0 + $0x8] sm:$0xff]
    %v24 = vld [vmem:[%s0 + $0x10] sm:$0xff]
    %v25 = vld [vmem:[%s0 + $0x18] sm:$0xff]
    %v26 = vld [vmem:[%s0 + $0x20] sm:$0xff]
    %v27 = vld [vmem:[%s0 + $0x28] sm:$0xff]
    %v28 = vld [vmem:[%s0 + $0x30] sm:$0xff]
    %v29 = vld [vmem:[%s0 + $0x38] sm:$0xff]
    %v30 = vunpack.c.l.bf16 %v22
    %v31 = vunpack.c.h.bf16 %v22
    %v32 = vunpack.c.l.bf16 %v23
    %v33 = vunpack.c.h.bf16 %v23
    %v34 = vunpack.c.l.bf16 %v24
    %v35 = vunpack.c.h.bf16 %v24
    %v36 = vunpack.c.l.bf16 %v25
    %v37 = vunpack.c.h.bf16 %v25
    %v38 = vunpack.c.l.bf16 %v26
    %v39 = vunpack.c.h.bf16 %v26
    %v40 = vunpack.c.l.bf16 %v27
    %v41 = vunpack.c.h.bf16 %v27
    %v42 = vunpack.c.l.bf16 %v28
    %v43 = vunpack.c.h.bf16 %v28
    %v44 = vunpack.c.l.bf16 %v29
    %v45 = vunpack.c.h.bf16 %v29
    %v46 = vld [vmem:[%s2] sm:$0x3]
    %v48 = vlaneseq
    %v49 = vshrl.u32 %v48, 7
    %v50 = vsub.s32 0, %v49
    %v51 = vrot.slane %v46, %v50
    %v52 = vlaneseq
    %v53 = vshrl.u32 %v52, 7
    %v54 = vsub.s32 1, %v53
    %v55 = vrot.slane %v46, %v54
    %v58 = vmul.f32 %v30, %v51
    %v59 = vmul.f32 %v31, %v55
    %v60 = vmul.f32 %v32, %v51
    %v61 = vmul.f32 %v33, %v55
    %v62 = vmul.f32 %v34, %v51
    %v63 = vmul.f32 %v35, %v55
    %v64 = vmul.f32 %v36, %v51
    %v65 = vmul.f32 %v37, %v55
    %v66 = vmul.f32 %v38, %v51
    %v67 = vmul.f32 %v39, %v55
    %v68 = vmul.f32 %v40, %v51
    %v69 = vmul.f32 %v41, %v55
    %v70 = vmul.f32 %v42, %v51
    %v71 = vmul.f32 %v43, %v55
    %v72 = vmul.f32 %v44, %v51
    %v73 = vmul.f32 %v45, %v55
    %v74 = vld [vmem:[%s3] sm:$0x3]
    %v76 = vlaneseq
    %v77 = vshrl.u32 %v76, 7
    %v78 = vsub.s32 0, %v77
    %v79 = vrot.slane %v74, %v78
    %v80 = vlaneseq
    %v81 = vshrl.u32 %v80, 7
    %v82 = vsub.s32 1, %v81
    %v83 = vrot.slane %v74, %v82
    %v86 = vadd.f32 %v58, %v79
    %v87 = vadd.f32 %v59, %v83
    %v88 = vadd.f32 %v60, %v79
    %v89 = vadd.f32 %v61, %v83
    %v90 = vadd.f32 %v62, %v79
    %v91 = vadd.f32 %v63, %v83
    %v92 = vadd.f32 %v64, %v79
    %v93 = vadd.f32 %v65, %v83
    %v94 = vadd.f32 %v66, %v79
    %v95 = vadd.f32 %v67, %v83
    %v96 = vadd.f32 %v68, %v79
    %v97 = vadd.f32 %v69, %v83
    %v98 = vadd.f32 %v70, %v79
    %v99 = vadd.f32 %v71, %v83
    %v100 = vadd.f32 %v72, %v79
    %v101 = vadd.f32 %v73, %v83
    %s102 = sld [smem:[#allocation2]]
    %v103 = vld [vmem:[%s1] sm:$0xff]
    %v104 = vld [vmem:[%s1 + $0x8] sm:$0xff]
    %v105 = vld [vmem:[%s1 + $0x10] sm:$0xff]
    %v106 = vld [vmem:[%s1 + $0x18] sm:$0xff]
    %v107 = vld [vmem:[%s1 + $0x20] sm:$0xff]
    %v108 = vld [vmem:[%s1 + $0x28] sm:$0xff]
    %v109 = vld [vmem:[%s1 + $0x30] sm:$0xff]
    %v110 = vld [vmem:[%s1 + $0x38] sm:$0xff]
    %v111 = vld [vmem:[%s1 + $0x40] sm:$0xff]
    %v112 = vld [vmem:[%s1 + $0x48] sm:$0xff]
    %v113 = vld [vmem:[%s1 + $0x50] sm:$0xff]
    %v114 = vld [vmem:[%s1 + $0x58] sm:$0xff]
    %v115 = vld [vmem:[%s1 + $0x60] sm:$0xff]
    %v116 = vld [vmem:[%s1 + $0x68] sm:$0xff]
    %v117 = vld [vmem:[%s1 + $0x70] sm:$0xff]
    %v118 = vld [vmem:[%s1 + $0x78] sm:$0xff]
    %v119 = vstv %s102
    %v120 = vmul.f32 %v119, %v103
    %v121 = vmul.f32 %v119, %v104
    %v122 = vmul.f32 %v119, %v105
    %v123 = vmul.f32 %v119, %v106
    %v124 = vmul.f32 %v119, %v107
    %v125 = vmul.f32 %v119, %v108
    %v126 = vmul.f32 %v119, %v109
    %v127 = vmul.f32 %v119, %v110
    %v128 = vmul.f32 %v119, %v111
    %v129 = vmul.f32 %v119, %v112
    %v130 = vmul.f32 %v119, %v113
    %v131 = vmul.f32 %v119, %v114
    %v132 = vmul.f32 %v119, %v115
    %v133 = vmul.f32 %v119, %v116
    %v134 = vmul.f32 %v119, %v117
    %v135 = vmul.f32 %v119, %v118
    %v136 = vadd.f32 %v86, %v120
    %v137 = vadd.f32 %v87, %v121
    %v138 = vadd.f32 %v88, %v122
    %v139 = vadd.f32 %v89, %v123
    %v140 = vadd.f32 %v90, %v124
    %v141 = vadd.f32 %v91, %v125
    %v142 = vadd.f32 %v92, %v126
    %v143 = vadd.f32 %v93, %v127
    %v144 = vadd.f32 %v94, %v128
    %v145 = vadd.f32 %v95, %v129
    %v146 = vadd.f32 %v96, %v130
    %v147 = vadd.f32 %v97, %v131
    %v148 = vadd.f32 %v98, %v132
    %v149 = vadd.f32 %v99, %v133
    %v150 = vadd.f32 %v100, %v134
    %v151 = vadd.f32 %v101, %v135
    %152 = vst [vmem:[#allocation3] sm:$0xff] %v136
    %153 = vst [vmem:[#allocation3 + $0x8] sm:$0xff] %v137
    %154 = vst [vmem:[#allocation3 + $0x10] sm:$0xff] %v138
    %155 = vst [vmem:[#allocation3 + $0x18] sm:$0xff] %v139
    %156 = vst [vmem:[#allocation3 + $0x20] sm:$0xff] %v140
    %157 = vst [vmem:[#allocation3 + $0x28] sm:$0xff] %v141
    %158 = vst [vmem:[#allocation3 + $0x30] sm:$0xff] %v142
    %159 = vst [vmem:[#allocation3 + $0x38] sm:$0xff] %v143
    %160 = vst [vmem:[#allocation3 + $0x40] sm:$0xff] %v144
    %161 = vst [vmem:[#allocation3 + $0x48] sm:$0xff] %v145
    %162 = vst [vmem:[#allocation3 + $0x50] sm:$0xff] %v146
    %163 = vst [vmem:[#allocation3 + $0x58] sm:$0xff] %v147
    %164 = vst [vmem:[#allocation3 + $0x60] sm:$0xff] %v148
    %165 = vst [vmem:[#allocation3 + $0x68] sm:$0xff] %v149
    %166 = vst [vmem:[#allocation3 + $0x70] sm:$0xff] %v150
    %167 = vst [vmem:[#allocation3 + $0x78] sm:$0xff] %v151
    // Predicated region
    $region22: #{nonlocal_block.3} parent=1 // pred_check
      _
    $region23: #{nonlocal_block.3} parent=1 // pred_check_branch
      %169 = sbr.rel (0) target = $region25
    $region24: #{nonlocal_block.3} parent=1 // pred_region
      %s171 = ssub.s32 2048, 2048
      %172 = vsyncadd [#allocation4], %s171
      %s173 = sshll.u32 [#allocation3], 4
      %s174 = int_to_ptr.vmem [resolvable:$true] %s173
      %179 = dma.vmem_to_hbm [thread:$0]  %s174, 2048, %s5, [#allocation4], 256, 256, 16
    $region25: #{nonlocal_block.3} parent=1 // pred_fallthru
      _
    // Predicated region
    $region26: #{nonlocal_block.3} parent=1 // pred_check
      _
    $region27: #{nonlocal_block.3} parent=1 // pred_check_branch
      %181 = sbr.rel (0) target = $region29
    $region28: #{nonlocal_block.3} parent=1 // pred_region
      %182 = dma.done [#allocation4], 2048
    $region29: #{nonlocal_block.3} parent=1 // pred_fallthru
      _
    %183 = vsyncpa [#allocation4], 1

// kernel: nonlocal_block.2
$region0: #{nonlocal_block.2}
  #allocation0 [shape = 'u32[]', space=smem, size = 0x4, offset = 0x4, fixed_abs, tag = 'smem constant byte address 0x4 - core index']
  #allocation1 [shape = 'u32[144,128]{1,0:T(1,128)}', space=vmem, size = 0x12000, scoped, tag = 'internal scratch']
  %s0 = inlined_call_operand.vmem [shape: f32[4,16,256], index: 0, kind: input, shape index: {}]
  %s1 = inlined_call_operand.vmem [shape: bf16[256,384], index: 1, kind: input, shape index: {}]
  %s2 = inlined_call_operand.vmem [shape: f32[1,384], index: 2, kind: input, shape index: {}]
  %s3 = inlined_call_operand.vmem [shape: bf16[128,256], index: 3, kind: input, shape index: {}]
  %s4 = inlined_call_operand.vmem [shape: f32[1,256], index: 4, kind: input, shape index: {}]
  %s5 = inlined_call_operand.vmem [shape: bf16[4,16,256], index: 5, kind: output, shape index: {0}]
  %s6 = inlined_call_operand.vmem [shape: f32[1,1,256], index: 6, kind: output, shape index: {1}]
  %s7 = inlined_call_operand.vmem [shape: f32[1,1,256], index: 7, kind: output, shape index: {2}]
  %8 = xla_tuple %s5, %s6, %s7
  %s9 = sld [smem:[#allocation0]]
  $region46: #{nonlocal_block.2} parent=0
    _
  %s11 = ssub.s32 1, %s9
  %s12 = scalar_select 0, %s11, %s9
  // Predicated region
  $region2: #{nonlocal_block.2} parent=0 // pred_check
    _
  $region3: #{nonlocal_block.2} parent=0 // pred_check_branch
    %14 = sbr.rel (0) target = $region5
  $region4: #{nonlocal_block.2} parent=0 // pred_region
    _
  $region5: #{nonlocal_block.2} parent=0 // pred_fallthru
    _
  // Predicated region
  $region6: #{nonlocal_block.2} parent=0 // pred_check
    _
  $region7: #{nonlocal_block.2} parent=0 // pred_check_branch
    %16 = sbr.rel (0) target = $region9
  $region8: #{nonlocal_block.2} parent=0 // pred_region
    _
  $region9: #{nonlocal_block.2} parent=0 // pred_fallthru
    _
  // Predicated region
  $region10: #{nonlocal_block.2} parent=0 // pred_check
    _
  $region11: #{nonlocal_block.2} parent=0 // pred_check_branch
    %18 = sbr.rel (0) target = $region13
  $region12: #{nonlocal_block.2} parent=0 // pred_region
    _
  $region13: #{nonlocal_block.2} parent=0 // pred_fallthru
    _
  // Predicated region
  $region14: #{nonlocal_block.2} parent=0 // pred_check
    _
  $region15: #{nonlocal_block.2} parent=0 // pred_check_branch
    %20 = sbr.rel (0) target = $region17
  $region16: #{nonlocal_block.2} parent=0 // pred_region
    _
  $region17: #{nonlocal_block.2} parent=0 // pred_fallthru
    _
  // Predicated region
  $region18: #{nonlocal_block.2} parent=0 // pred_check
    _
  $region19: #{nonlocal_block.2} parent=0 // pred_check_branch
    %22 = sbr.rel (0) target = $region21
  $region20: #{nonlocal_block.2} parent=0 // pred_region
    _
  $region21: #{nonlocal_block.2} parent=0 // pred_fallthru
    _
  %v24 = vld [vmem:[%s0] sm:$0xff]
  %v25 = vld [vmem:[%s0 + $0x8] sm:$0xff]
  %v26 = vld [vmem:[%s0 + $0x10] sm:$0xff]
  %v27 = vld [vmem:[%s0 + $0x18] sm:$0xff]
  %v28 = vld [vmem:[%s0 + $0x20] sm:$0xff]
  %v29 = vld [vmem:[%s0 + $0x28] sm:$0xff]
  %v30 = vld [vmem:[%s0 + $0x30] sm:$0xff]
  %v31 = vld [vmem:[%s0 + $0x38] sm:$0xff]
  %v32 = vld [vmem:[%s0 + $0x40] sm:$0xff]
  %v33 = vld [vmem:[%s0 + $0x48] sm:$0xff]
  %v34 = vld [vmem:[%s0 + $0x50] sm:$0xff]
  %v35 = vld [vmem:[%s0 + $0x58] sm:$0xff]
  %v36 = vld [vmem:[%s0 + $0x60] sm:$0xff]
  %v37 = vld [vmem:[%s0 + $0x68] sm:$0xff]
  %v38 = vld [vmem:[%s0 + $0x70] sm:$0xff]
  %v39 = vld [vmem:[%s0 + $0x78] sm:$0xff]
  %v40 = vpack.c.bf16 %v26, %v24
  %v41 = vpack.c.bf16 %v27, %v25
  %v42 = vpack.c.bf16 %v30, %v28
  %v43 = vpack.c.bf16 %v31, %v29
  %v44 = vpack.c.bf16 %v34, %v32
  %v45 = vpack.c.bf16 %v35, %v33
  %v46 = vpack.c.bf16 %v38, %v36
  %v47 = vpack.c.bf16 %v39, %v37
  %v48 = vld [vmem:[%s1] sm:$0xff]
  %v49 = vld [vmem:[%s1 + $0x8] sm:$0xf]
  %v50 = vld [vmem:[%s1 + $0xc] sm:$0xff]
  %v51 = vld [vmem:[%s1 + $0x14] sm:$0xf]
  %v52 = vld [vmem:[%s1 + $0x18] sm:$0xff]
  %v53 = vld [vmem:[%s1 + $0x20] sm:$0xf]
  %v54 = vld [vmem:[%s1 + $0x24] sm:$0xff]
  %v55 = vld [vmem:[%s1 + $0x2c] sm:$0xf]
  %v56 = vld [vmem:[%s1 + $0x30] sm:$0xff]
  %v57 = vld [vmem:[%s1 + $0x38] sm:$0xf]
  %v58 = vld [vmem:[%s1 + $0x3c] sm:$0xff]
  %v59 = vld [vmem:[%s1 + $0x44] sm:$0xf]
  %v60 = vld [vmem:[%s1 + $0x48] sm:$0xff]
  %v61 = vld [vmem:[%s1 + $0x50] sm:$0xf]
  %v62 = vld [vmem:[%s1 + $0x54] sm:$0xff]
  %v63 = vld [vmem:[%s1 + $0x5c] sm:$0xf]
  %v64 = vld [vmem:[%s1 + $0x60] sm:$0xff]
  %v65 = vld [vmem:[%s1 + $0x68] sm:$0xf]
  %v66 = vld [vmem:[%s1 + $0x6c] sm:$0xff]
  %v67 = vld [vmem:[%s1 + $0x74] sm:$0xf]
  %v68 = vld [vmem:[%s1 + $0x78] sm:$0xff]
  %v69 = vld [vmem:[%s1 + $0x80] sm:$0xf]
  %v70 = vld [vmem:[%s1 + $0x84] sm:$0xff]
  %v71 = vld [vmem:[%s1 + $0x8c] sm:$0xf]
  %v72 = vld [vmem:[%s1 + $0x90] sm:$0xff]
  %v73 = vld [vmem:[%s1 + $0x98] sm:$0xf]
  %v74 = vld [vmem:[%s1 + $0x9c] sm:$0xff]
  %v75 = vld [vmem:[%s1 + $0xa4] sm:$0xf]
  %v76 = vld [vmem:[%s1 + $0xa8] sm:$0xff]
  %v77 = vld [vmem:[%s1 + $0xb0] sm:$0xf]
  %v78 = vld [vmem:[%s1 + $0xb4] sm:$0xff]
  %v79 = vld [vmem:[%s1 + $0xbc] sm:$0xf]
  %v80 = vld [vmem:[%s1 + $0xc0] sm:$0xff]
  %v81 = vld [vmem:[%s1 + $0xc8] sm:$0xf]
  %v82 = vld [vmem:[%s1 + $0xcc] sm:$0xff]
  %v83 = vld [vmem:[%s1 + $0xd4] sm:$0xf]
  %v84 = vld [vmem:[%s1 + $0xd8] sm:$0xff]
  %v85 = vld [vmem:[%s1 + $0xe0] sm:$0xf]
  %v86 = vld [vmem:[%s1 + $0xe4] sm:$0xff]
  %v87 = vld [vmem:[%s1 + $0xec] sm:$0xf]
  %v88 = vld [vmem:[%s1 + $0xf0] sm:$0xff]
  %v89 = vld [vmem:[%s1 + $0xf8] sm:$0xf]
  %v90 = vld [vmem:[%s1 + $0xfc] sm:$0xff]
  %v91 = vld [vmem:[%s1 + $0x104] sm:$0xf]
  %v92 = vld [vmem:[%s1 + $0x108] sm:$0xff]
  %v93 = vld [vmem:[%s1 + $0x110] sm:$0xf]
  %v94 = vld [vmem:[%s1 + $0x114] sm:$0xff]
  %v95 = vld [vmem:[%s1 + $0x11c] sm:$0xf]
  %v96 = vld [vmem:[%s1 + $0x120] sm:$0xff]
  %v97 = vld [vmem:[%s1 + $0x128] sm:$0xf]
  %v98 = vld [vmem:[%s1 + $0x12c] sm:$0xff]
  %v99 = vld [vmem:[%s1 + $0x134] sm:$0xf]
  %v100 = vld [vmem:[%s1 + $0x138] sm:$0xff]
  %v101 = vld [vmem:[%s1 + $0x140] sm:$0xf]
  %v102 = vld [vmem:[%s1 + $0x144] sm:$0xff]
  %v103 = vld [vmem:[%s1 + $0x14c] sm:$0xf]
  %v104 = vld [vmem:[%s1 + $0x150] sm:$0xff]
  %v105 = vld [vmem:[%s1 + $0x158] sm:$0xf]
  %v106 = vld [vmem:[%s1 + $0x15c] sm:$0xff]
  %v107 = vld [vmem:[%s1 + $0x164] sm:$0xf]
  %v108 = vld [vmem:[%s1 + $0x168] sm:$0xff]
  %v109 = vld [vmem:[%s1 + $0x170] sm:$0xf]
  %v110 = vld [vmem:[%s1 + $0x174] sm:$0xff]
  %v111 = vld [vmem:[%s1 + $0x17c] sm:$0xf]
  %v112 = vld [vmem:[%s2] sm:$0x7]
  %v114 = vlaneseq
  %v115 = vshrl.u32 %v114, 7
  %v116 = vsub.s32 0, %v115
  %v117 = vrot.slane %v112, %v116
  %v118 = vlaneseq
  %v119 = vshrl.u32 %v118, 7
  %v120 = vsub.s32 1, %v119
  %v121 = vrot.slane %v112, %v120
  %v122 = vlaneseq
  %v123 = vshrl.u32 %v122, 7
  %v124 = vsub.s32 2, %v123
  %v125 = vrot.slane %v112, %v124
  %v193 = vunpack.c.l.b16 %v48
  %v194 = vunpack.c.h.b16 %v48
  %v195 = vunpack.c.l.b16 %v49
  %v196 = vunpack.c.l.b16 %v50
  %v197 = vunpack.c.h.b16 %v50
  %v198 = vunpack.c.l.b16 %v51
  %v199 = vunpack.c.l.b16 %v52
  %v200 = vunpack.c.h.b16 %v52
  %v201 = vunpack.c.l.b16 %v53
  %v202 = vunpack.c.l.b16 %v54
  %v203 = vunpack.c.h.b16 %v54
  %v204 = vunpack.c.l.b16 %v55
  %v205 = vunpack.c.l.b16 %v56
  %v206 = vunpack.c.h.b16 %v56
  %v207 = vunpack.c.l.b16 %v57
  %v208 = vunpack.c.l.b16 %v58
  %v209 = vunpack.c.h.b16 %v58
  %v210 = vunpack.c.l.b16 %v59
  %v211 = vunpack.c.l.b16 %v60
  %v212 = vunpack.c.h.b16 %v60
  %v213 = vunpack.c.l.b16 %v61
  %v214 = vunpack.c.l.b16 %v62
  %v215 = vunpack.c.h.b16 %v62
  %v216 = vunpack.c.l.b16 %v63
  %v217 = vunpack.c.l.b16 %v64
  %v218 = vunpack.c.h.b16 %v64
  %v219 = vunpack.c.l.b16 %v65
  %v220 = vunpack.c.l.b16 %v66
  %v221 = vunpack.c.h.b16 %v66
  %v222 = vunpack.c.l.b16 %v67
  %v223 = vunpack.c.l.b16 %v68
  %v224 = vunpack.c.h.b16 %v68
  %v225 = vunpack.c.l.b16 %v69
  %v226 = vunpack.c.l.b16 %v70
  %v227 = vunpack.c.h.b16 %v70
  %v228 = vunpack.c.l.b16 %v71
  %v229 = vunpack.c.l.b16 %v72
  %v230 = vunpack.c.h.b16 %v72
  %v231 = vunpack.c.l.b16 %v73
  %v232 = vunpack.c.l.b16 %v74
  %v233 = vunpack.c.h.b16 %v74
  %v234 = vunpack.c.l.b16 %v75
  %v235 = vunpack.c.l.b16 %v76
  %v236 = vunpack.c.h.b16 %v76
  %v237 = vunpack.c.l.b16 %v77
  %v238 = vunpack.c.l.b16 %v78
  %v239 = vunpack.c.h.b16 %v78
  %v240 = vunpack.c.l.b16 %v79
  %v241 = vunpack.c.l.b16 %v80
  %v242 = vunpack.c.h.b16 %v80
  %v243 = vunpack.c.l.b16 %v81
  %v244 = vunpack.c.l.b16 %v82
  %v245 = vunpack.c.h.b16 %v82
  %v246 = vunpack.c.l.b16 %v83
  %v247 = vunpack.c.l.b16 %v84
  %v248 = vunpack.c.h.b16 %v84
  %v249 = vunpack.c.l.b16 %v85
  %v250 = vunpack.c.l.b16 %v86
  %v251 = vunpack.c.h.b16 %v86
  %v252 = vunpack.c.l.b16 %v87
  %v253 = vunpack.c.l.b16 %v88
  %v254 = vunpack.c.h.b16 %v88
  %v255 = vunpack.c.l.b16 %v89
  %v256 = vunpack.c.l.b16 %v90
  %v257 = vunpack.c.h.b16 %v90
  %v258 = vunpack.c.l.b16 %v91
  %v259 = vunpack.c.l.b16 %v92
  %v260 = vunpack.c.h.b16 %v92
  %v261 = vunpack.c.l.b16 %v93
  %v262 = vunpack.c.l.b16 %v94
  %v263 = vunpack.c.h.b16 %v94
  %v264 = vunpack.c.l.b16 %v95
  %v265 = vunpack.c.l.b16 %v96
  %v266 = vunpack.c.h.b16 %v96
  %v267 = vunpack.c.l.b16 %v97
  %v268 = vunpack.c.l.b16 %v98
  %v269 = vunpack.c.h.b16 %v98
  %v270 = vunpack.c.l.b16 %v99
  %v271 = vunpack.c.l.b16 %v100
  %v272 = vunpack.c.h.b16 %v100
  %v273 = vunpack.c.l.b16 %v101
  %v274 = vunpack.c.l.b16 %v102
  %v275 = vunpack.c.h.b16 %v102
  %v276 = vunpack.c.l.b16 %v103
  %v277 = vunpack.c.l.b16 %v104
  %v278 = vunpack.c.h.b16 %v104
  %v279 = vunpack.c.l.b16 %v105
  %v280 = vunpack.c.l.b16 %v106
  %v281 = vunpack.c.h.b16 %v106
  %v282 = vunpack.c.l.b16 %v107
  %v283 = vunpack.c.l.b16 %v108
  %v284 = vunpack.c.h.b16 %v108
  %v285 = vunpack.c.l.b16 %v109
  %v286 = vunpack.c.l.b16 %v110
  %v287 = vunpack.c.h.b16 %v110
  %v288 = vunpack.c.l.b16 %v111
  %v289 = vpack.c.b16 %v196, %v193
  %v290 = vpack.c.b16 %v197, %v194
  %v291 = vpack.c.b16 %v198, %v195
  %v292 = vpack.c.b16 %v202, %v199
  %v293 = vpack.c.b16 %v203, %v200
  %v294 = vpack.c.b16 %v204, %v201
  %v295 = vpack.c.b16 %v208, %v205
  %v296 = vpack.c.b16 %v209, %v206
  %v297 = vpack.c.b16 %v210, %v207
  %v298 = vpack.c.b16 %v214, %v211
  %v299 = vpack.c.b16 %v215, %v212
  %v300 = vpack.c.b16 %v216, %v213
  %v301 = vpack.c.b16 %v220, %v217
  %v302 = vpack.c.b16 %v221, %v218
  %v303 = vpack.c.b16 %v222, %v219
  %v304 = vpack.c.b16 %v226, %v223
  %v305 = vpack.c.b16 %v227, %v224
  %v306 = vpack.c.b16 %v228, %v225
  %v307 = vpack.c.b16 %v232, %v229
  %v308 = vpack.c.b16 %v233, %v230
  %v309 = vpack.c.b16 %v234, %v231
  %v310 = vpack.c.b16 %v238, %v235
  %v311 = vpack.c.b16 %v239, %v236
  %v312 = vpack.c.b16 %v240, %v237
  %v313 = vpack.c.b16 %v244, %v241
  %v314 = vpack.c.b16 %v245, %v242
  %v315 = vpack.c.b16 %v246, %v243
  %v316 = vpack.c.b16 %v250, %v247
  %v317 = vpack.c.b16 %v251, %v248
  %v318 = vpack.c.b16 %v252, %v249
  %v319 = vpack.c.b16 %v256, %v253
  %v320 = vpack.c.b16 %v257, %v254
  %v321 = vpack.c.b16 %v258, %v255
  %v322 = vpack.c.b16 %v262, %v259
  %v323 = vpack.c.b16 %v263, %v260
  %v324 = vpack.c.b16 %v264, %v261
  %v325 = vpack.c.b16 %v268, %v265
  %v326 = vpack.c.b16 %v269, %v266
  %v327 = vpack.c.b16 %v270, %v267
  %v328 = vpack.c.b16 %v274, %v271
  %v329 = vpack.c.b16 %v275, %v272
  %v330 = vpack.c.b16 %v276, %v273
  %v331 = vpack.c.b16 %v280, %v277
  %v332 = vpack.c.b16 %v281, %v278
  %v333 = vpack.c.b16 %v282, %v279
  %v334 = vpack.c.b16 %v286, %v283
  %v335 = vpack.c.b16 %v287, %v284
  %v336 = vpack.c.b16 %v288, %v285
  %385 = vmatprep.subr.bf16.mxu0 %v311
  %386 = vmatpush1.bf16.msra.mxu0 %v310
  %387 = vmatprep.subr.bf16.mxu0 %v308
  %388 = vmatpush1.bf16.msra.mxu0 %v307
  %389 = vmatprep.subr.bf16.mxu0 %v305
  %390 = vmatpush1.bf16.msra.mxu0 %v304
  %391 = vmatprep.subr.bf16.mxu0 %v302
  %392 = vmatpush1.bf16.msra.mxu0 %v301
  %393 = vmatprep.subr.bf16.mxu0 %v299
  %394 = vmatpush1.bf16.msra.mxu0 %v298
  %395 = vmatprep.subr.bf16.mxu0 %v296
  %396 = vmatpush1.bf16.msra.mxu0 %v295
  %397 = vmatprep.subr.bf16.mxu0 %v293
  %398 = vmatpush1.bf16.msra.mxu0 %v292
  %399 = vmatprep.subr.bf16.mxu0 %v290
  %400 = vmatpush1.bf16.msra.mxu0 %v289
  %401 = vmatprep.subr.bf16.mxu0 %v335
  %402 = vmatpush2.bf16.msra.mxu0 %v334
  %403 = vmatprep.subr.bf16.mxu0 %v332
  %404 = vmatpush2.bf16.msra.mxu0 %v331
  %405 = vmatprep.subr.bf16.mxu0 %v329
  %406 = vmatpush2.bf16.msra.mxu0 %v328
  %407 = vmatprep.subr.bf16.mxu0 %v326
  %408 = vmatpush2.bf16.msra.mxu0 %v325
  %409 = vmatprep.subr.bf16.mxu0 %v323
  %410 = vmatpush2.bf16.msra.mxu0 %v322
  %411 = vmatprep.subr.bf16.mxu0 %v320
  %412 = vmatpush2.bf16.msra.mxu0 %v319
  %413 = vmatprep.subr.bf16.mxu0 %v317
  %414 = vmatpush2.bf16.msra.mxu0 %v316
  %415 = vmatprep.subr.bf16.mxu0 %v314
  %416 = vmatpush2.bf16.msra.mxu0 %v313
  %417 = vmatprep.mubr.bf16.mxu0 %v41
  %418 = vmatmul.mubr.bf16.gmra.mxu0 %v40
  %v419 = vpop.f32.mrf.mxu0
  %v420 = vadd.f32 %v117, %v419
  %v421 = vpop.f32.mrf.mxu0
  %v422 = vadd.f32 %v121, %v421
  %v423 = vpop.f32.mrf.mxu0
  %v424 = vadd.f32 %v117, %v423
  %v425 = vpop.f32.mrf.mxu0
  %v426 = vadd.f32 %v121, %v425
  %427 = vmatprep.mubr.bf16.mxu0 %v43
  %428 = vmatmul.mubr.bf16.gmra.mxu0 %v42
  %v429 = vpop.f32.mrf.mxu0
  %v430 = vadd.f32 %v117, %v429
  %v431 = vpop.f32.mrf.mxu0
  %v432 = vadd.f32 %v121, %v431
  %v433 = vpop.f32.mrf.mxu0
  %v434 = vadd.f32 %v117, %v433
  %v435 = vpop.f32.mrf.mxu0
  %v436 = vadd.f32 %v121, %v435
  %437 = vmatprep.mubr.bf16.mxu0 %v45
  %438 = vmatmul.mubr.bf16.gmra.mxu0 %v44
  %v439 = vpop.f32.mrf.mxu0
  %v440 = vadd.f32 %v117, %v439
  %v441 = vpop.f32.mrf.mxu0
  %v442 = vadd.f32 %v121, %v441
  %v443 = vpop.f32.mrf.mxu0
  %v444 = vadd.f32 %v117, %v443
  %v445 = vpop.f32.mrf.mxu0
  %v446 = vadd.f32 %v121, %v445
  %447 = vmatprep.mubr.bf16.mxu0 %v47
  %448 = vmatmul.mubr.bf16.gmra.mxu0 %v46
  %v449 = vpop.f32.mrf.mxu0
  %v450 = vadd.f32 %v117, %v449
  %v451 = vpop.f32.mrf.mxu0
  %v452 = vadd.f32 %v121, %v451
  %v453 = vpop.f32.mrf.mxu0
  %v454 = vadd.f32 %v117, %v453
  %v455 = vpop.f32.mrf.mxu0
  %v456 = vadd.f32 %v121, %v455
  %457 = vdwg.mxu0
  %458 = vmatprep.subr.bf16.mxu0 0
  %459 = vmatpush1.bf16.msra.mxu0 %v312
  %460 = vmatprep.subr.bf16.mxu0 0
  %461 = vmatpush1.bf16.msra.mxu0 %v309
  %462 = vmatprep.subr.bf16.mxu0 0
  %463 = vmatpush1.bf16.msra.mxu0 %v306
  %464 = vmatprep.subr.bf16.mxu0 0
  %465 = vmatpush1.bf16.msra.mxu0 %v303
  %466 = vmatprep.subr.bf16.mxu0 0
  %467 = vmatpush1.bf16.msra.mxu0 %v300
  %468 = vmatprep.subr.bf16.mxu0 0
  %469 = vmatpush1.bf16.msra.mxu0 %v297
  %470 = vmatprep.subr.bf16.mxu0 0
  %471 = vmatpush1.bf16.msra.mxu0 %v294
  %472 = vmatprep.subr.bf16.mxu0 0
  %473 = vmatpush1.bf16.msra.mxu0 %v291
  %474 = vmatprep.subr.bf16.mxu0 0
  %475 = vmatpush2.bf16.msra.mxu0 %v336
  %476 = vmatprep.subr.bf16.mxu0 0
  %477 = vmatpush2.bf16.msra.mxu0 %v333
  %478 = vmatprep.subr.bf16.mxu0 0
  %479 = vmatpush2.bf16.msra.mxu0 %v330
  %480 = vmatprep.subr.bf16.mxu0 0
  %481 = vmatpush2.bf16.msra.mxu0 %v327
  %482 = vmatprep.subr.bf16.mxu0 0
  %483 = vmatpush2.bf16.msra.mxu0 %v324
  %484 = vmatprep.subr.bf16.mxu0 0
  %485 = vmatpush2.bf16.msra.mxu0 %v321
  %486 = vmatprep.subr.bf16.mxu0 0
  %487 = vmatpush2.bf16.msra.mxu0 %v318
  %488 = vmatprep.subr.bf16.mxu0 0
  %489 = vmatpush2.bf16.msra.mxu0 %v315
  %490 = vmatprep.mubr.bf16.mxu0 %v41
  %491 = vmatmul.mubr.bf16.gmra.mxu0 %v40
  %v492 = vpop.f32.mrf.mxu0
  %v493 = vadd.f32 %v125, %v492
  %v494 = vpop.f32.mrf.mxu0
  %v495 = vpop.f32.mrf.mxu0
  %v496 = vadd.f32 %v125, %v495
  %v497 = vpop.f32.mrf.mxu0
  %498 = vmatprep.mubr.bf16.mxu0 %v43
  %499 = vmatmul.mubr.bf16.gmra.mxu0 %v42
  %v500 = vpop.f32.mrf.mxu0
  %v501 = vadd.f32 %v125, %v500
  %v502 = vpop.f32.mrf.mxu0
  %v503 = vpop.f32.mrf.mxu0
  %v504 = vadd.f32 %v125, %v503
  %v505 = vpop.f32.mrf.mxu0
  %506 = vmatprep.mubr.bf16.mxu0 %v45
  %507 = vmatmul.mubr.bf16.gmra.mxu0 %v44
  %v508 = vpop.f32.mrf.mxu0
  %v509 = vadd.f32 %v125, %v508
  %v510 = vpop.f32.mrf.mxu0
  %v511 = vpop.f32.mrf.mxu0
  %v512 = vadd.f32 %v125, %v511
  %v513 = vpop.f32.mrf.mxu0
  %514 = vmatprep.mubr.bf16.mxu0 %v47
  %515 = vmatmul.mubr.bf16.gmra.mxu0 %v46
  %v516 = vpop.f32.mrf.mxu0
  %v517 = vadd.f32 %v125, %v516
  %v518 = vpop.f32.mrf.mxu0
  %v519 = vpop.f32.mrf.mxu0
  %v520 = vadd.f32 %v125, %v519
  %v521 = vpop.f32.mrf.mxu0
  %522 = vdwg.mxu0
  %v523 = vpack.c.bf16 %v424, %v420
  %v524 = vpack.c.bf16 %v434, %v430
  %v525 = vpack.c.bf16 %v444, %v440
  %v526 = vpack.c.bf16 %v454, %v450
  %v527 = vpack.c.bf16 %v426, %v422
  %v528 = vpack.c.bf16 %v436, %v432
  %v529 = vpack.c.bf16 %v446, %v442
  %v530 = vpack.c.bf16 %v456, %v452
  %v531 = vpack.c.bf16 %v496, %v493
  %v532 = vpack.c.bf16 %v504, %v501
  %v533 = vpack.c.bf16 %v512, %v509
  %v534 = vpack.c.bf16 %v520, %v517
  %535 = vmatprep.subr.bf16.mxu0 0
  %536 = vmatpush1.bf16.xpose.msra.mxu0 0
  %537 = vmatprep.subr.bf16.mxu0 0
  %538 = vmatpush1.bf16.xpose.msra.mxu0 0
  %539 = vmatprep.subr.bf16.mxu0 0
  %540 = vmatpush1.bf16.xpose.msra.mxu0 0
  %541 = vmatprep.subr.bf16.mxu0 0
  %542 = vmatpush1.bf16.xpose.msra.mxu0 0
  %543 = vmatprep.subr.bf16.mxu0 0
  %544 = vmatpush1.bf16.xpose.msra.mxu0 0
  %545 = vmatprep.subr.bf16.mxu0 0
  %546 = vmatpush1.bf16.xpose.msra.mxu0 0
  %547 = vmatprep.subr.bf16.mxu0 0
  %548 = vmatpush1.bf16.xpose.msra.mxu0 0
  %549 = vmatprep.subr.bf16.mxu0 0
  %550 = vmatpush1.bf16.xpose.msra.mxu0 %v527
  %551 = vmatprep.subr.bf16.mxu0 0
  %552 = vmatpush2.bf16.xpose.msra.mxu0 0
  %553 = vmatprep.subr.bf16.mxu0 0
  %554 = vmatpush2.bf16.xpose.msra.mxu0 0
  %555 = vmatprep.subr.bf16.mxu0 0
  %556 = vmatpush2.bf16.xpose.msra.mxu0 0
  %557 = vmatprep.subr.bf16.mxu0 0
  %558 = vmatpush2.bf16.xpose.msra.mxu0 0
  %559 = vmatprep.subr.bf16.mxu0 0
  %560 = vmatpush2.bf16.xpose.msra.mxu0 0
  %561 = vmatprep.subr.bf16.mxu0 0
  %562 = vmatpush2.bf16.xpose.msra.mxu0 0
  %563 = vmatprep.subr.bf16.mxu0 0
  %564 = vmatpush2.bf16.xpose.msra.mxu0 0
  %565 = vmatprep.subr.bf16.mxu0 0
  %566 = vmatpush2.bf16.xpose.msra.mxu0 0
  %567 = vmatprep.mubr.bf16.mxu0 0
  %568 = vmatmul.mubr.bf16.gmra.mxu0 %v523
  %v569 = vpop.f32.mrf.mxu0
  %v570 = vadd.f32 0.0, %v569
  %v571 = vpop.f32.mrf.mxu0
  %v572 = vpop.f32.mrf.mxu0
  %v573 = vadd.f32 0.0, %v572
  %v574 = vpop.f32.mrf.mxu0
  %575 = vdwg.mxu0
  %576 = vmatprep.subr.bf16.mxu0 0
  %577 = vmatpush1.bf16.xpose.msra.mxu0 0
  %578 = vmatprep.subr.bf16.mxu0 0
  %579 = vmatpush1.bf16.xpose.msra.mxu0 0
  %580 = vmatprep.subr.bf16.mxu0 0
  %581 = vmatpush1.bf16.xpose.msra.mxu0 0
  %582 = vmatprep.subr.bf16.mxu0 0
  %583 = vmatpush1.bf16.xpose.msra.mxu0 0
  %584 = vmatprep.subr.bf16.mxu0 0
  %585 = vmatpush1.bf16.xpose.msra.mxu0 0
  %586 = vmatprep.subr.bf16.mxu0 0
  %587 = vmatpush1.bf16.xpose.msra.mxu0 0
  %588 = vmatprep.subr.bf16.mxu0 0
  %589 = vmatpush1.bf16.xpose.msra.mxu0 0
  %590 = vmatprep.subr.bf16.mxu0 0
  %591 = vmatpush1.bf16.xpose.msra.mxu0 %v528
  %592 = vmatprep.subr.bf16.mxu0 0
  %593 = vmatpush2.bf16.xpose.msra.mxu0 0
  %594 = vmatprep.subr.bf16.mxu0 0
  %595 = vmatpush2.bf16.xpose.msra.mxu0 0
  %596 = vmatprep.subr.bf16.mxu0 0
  %597 = vmatpush2.bf16.xpose.msra.mxu0 0
  %598 = vmatprep.subr.bf16.mxu0 0
  %599 = vmatpush2.bf16.xpose.msra.mxu0 0
  %600 = vmatprep.subr.bf16.mxu0 0
  %601 = vmatpush2.bf16.xpose.msra.mxu0 0
  %602 = vmatprep.subr.bf16.mxu0 0
  %603 = vmatpush2.bf16.xpose.msra.mxu0 0
  %604 = vmatprep.subr.bf16.mxu0 0
  %605 = vmatpush2.bf16.xpose.msra.mxu0 0
  %606 = vmatprep.subr.bf16.mxu0 0
  %607 = vmatpush2.bf16.xpose.msra.mxu0 0
  %608 = vmatprep.mubr.bf16.mxu0 0
  %609 = vmatmul.mubr.bf16.gmra.mxu0 %v524
  %v610 = vpop.f32.mrf.mxu0
  %v611 = vadd.f32 0.0, %v610
  %v612 = vpop.f32.mrf.mxu0
  %v613 = vpop.f32.mrf.mxu0
  %v614 = vadd.f32 0.0, %v613
  %v615 = vpop.f32.mrf.mxu0
  %616 = vdwg.mxu0
  %617 = vmatprep.subr.bf16.mxu0 0
  %618 = vmatpush1.bf16.xpose.msra.mxu0 0
  %619 = vmatprep.subr.bf16.mxu0 0
  %620 = vmatpush1.bf16.xpose.msra.mxu0 0
  %621 = vmatprep.subr.bf16.mxu0 0
  %622 = vmatpush1.bf16.xpose.msra.mxu0 0
  %623 = vmatprep.subr.bf16.mxu0 0
  %624 = vmatpush1.bf16.xpose.msra.mxu0 0
  %625 = vmatprep.subr.bf16.mxu0 0
  %626 = vmatpush1.bf16.xpose.msra.mxu0 0
  %627 = vmatprep.subr.bf16.mxu0 0
  %628 = vmatpush1.bf16.xpose.msra.mxu0 0
  %629 = vmatprep.subr.bf16.mxu0 0
  %630 = vmatpush1.bf16.xpose.msra.mxu0 0
  %631 = vmatprep.subr.bf16.mxu0 0
  %632 = vmatpush1.bf16.xpose.msra.mxu0 %v529
  %633 = vmatprep.subr.bf16.mxu0 0
  %634 = vmatpush2.bf16.xpose.msra.mxu0 0
  %635 = vmatprep.subr.bf16.mxu0 0
  %636 = vmatpush2.bf16.xpose.msra.mxu0 0
  %637 = vmatprep.subr.bf16.mxu0 0
  %638 = vmatpush2.bf16.xpose.msra.mxu0 0
  %639 = vmatprep.subr.bf16.mxu0 0
  %640 = vmatpush2.bf16.xpose.msra.mxu0 0
  %641 = vmatprep.subr.bf16.mxu0 0
  %642 = vmatpush2.bf16.xpose.msra.mxu0 0
  %643 = vmatprep.subr.bf16.mxu0 0
  %644 = vmatpush2.bf16.xpose.msra.mxu0 0
  %645 = vmatprep.subr.bf16.mxu0 0
  %646 = vmatpush2.bf16.xpose.msra.mxu0 0
  %647 = vmatprep.subr.bf16.mxu0 0
  %648 = vmatpush2.bf16.xpose.msra.mxu0 0
  %649 = vmatprep.mubr.bf16.mxu0 0
  %650 = vmatmul.mubr.bf16.gmra.mxu0 %v525
  %v651 = vpop.f32.mrf.mxu0
  %v652 = vadd.f32 0.0, %v651
  %v653 = vpop.f32.mrf.mxu0
  %v654 = vpop.f32.mrf.mxu0
  %v655 = vadd.f32 0.0, %v654
  %v656 = vpop.f32.mrf.mxu0
  %657 = vdwg.mxu0
  %658 = vmatprep.subr.bf16.mxu0 0
  %659 = vmatpush1.bf16.xpose.msra.mxu0 0
  %660 = vmatprep.subr.bf16.mxu0 0
  %661 = vmatpush1.bf16.xpose.msra.mxu0 0
  %662 = vmatprep.subr.bf16.mxu0 0
  %663 = vmatpush1.bf16.xpose.msra.mxu0 0
  %664 = vmatprep.subr.bf16.mxu0 0
  %665 = vmatpush1.bf16.xpose.msra.mxu0 0
  %666 = vmatprep.subr.bf16.mxu0 0
  %667 = vmatpush1.bf16.xpose.msra.mxu0 0
  %668 = vmatprep.subr.bf16.mxu0 0
  %669 = vmatpush1.bf16.xpose.msra.mxu0 0
  %670 = vmatprep.subr.bf16.mxu0 0
  %671 = vmatpush1.bf16.xpose.msra.mxu0 0
  %672 = vmatprep.subr.bf16.mxu0 0
  %673 = vmatpush1.bf16.xpose.msra.mxu0 %v530
  %674 = vmatprep.subr.bf16.mxu0 0
  %675 = vmatpush2.bf16.xpose.msra.mxu0 0
  %676 = vmatprep.subr.bf16.mxu0 0
  %677 = vmatpush2.bf16.xpose.msra.mxu0 0
  %678 = vmatprep.subr.bf16.mxu0 0
  %679 = vmatpush2.bf16.xpose.msra.mxu0 0
  %680 = vmatprep.subr.bf16.mxu0 0
  %681 = vmatpush2.bf16.xpose.msra.mxu0 0
  %682 = vmatprep.subr.bf16.mxu0 0
  %683 = vmatpush2.bf16.xpose.msra.mxu0 0
  %684 = vmatprep.subr.bf16.mxu0 0
  %685 = vmatpush2.bf16.xpose.msra.mxu0 0
  %686 = vmatprep.subr.bf16.mxu0 0
  %687 = vmatpush2.bf16.xpose.msra.mxu0 0
  %688 = vmatprep.subr.bf16.mxu0 0
  %689 = vmatpush2.bf16.xpose.msra.mxu0 0
  %690 = vmatprep.mubr.bf16.mxu0 0
  %691 = vmatmul.mubr.bf16.gmra.mxu0 %v526
  %v692 = vpop.f32.mrf.mxu0
  %v693 = vadd.f32 0.0, %v692
  %v694 = vpop.f32.mrf.mxu0
  %v695 = vpop.f32.mrf.mxu0
  %v696 = vadd.f32 0.0, %v695
  %v697 = vpop.f32.mrf.mxu0
  %698 = vdwg.mxu0
  %vm699 = vcmask 130048
  %v700 = vsel %vm699, %v570, -inf
  %701 = vmax.xlane.f32.xlu0 %v700
  %v702 = vpop.xlane.xlu0 %701
  %v703 = vsel %vm699, %v573, -inf
  %704 = vmax.xlane.f32.xlu0 %v703
  %v705 = vpop.xlane.xlu0 %704
  %v706 = vsel %vm699, %v611, -inf
  %707 = vmax.xlane.f32.xlu0 %v706
  %v708 = vpop.xlane.xlu0 %707
  %v709 = vsel %vm699, %v614, -inf
  %710 = vmax.xlane.f32.xlu0 %v709
  %v711 = vpop.xlane.xlu0 %710
  %v712 = vsel %vm699, %v652, -inf
  %713 = vmax.xlane.f32.xlu0 %v712
  %v714 = vpop.xlane.xlu0 %713
  %v715 = vsel %vm699, %v655, -inf
  %716 = vmax.xlane.f32.xlu0 %v715
  %v717 = vpop.xlane.xlu0 %716
  %v718 = vsel %vm699, %v693, -inf
  %719 = vmax.xlane.f32.xlu0 %v718
  %v720 = vpop.xlane.xlu0 %719
  %v721 = vsel %vm699, %v696, -inf
  %722 = vmax.xlane.f32.xlu0 %v721
  %v723 = vpop.xlane.xlu0 %722
  %v724 = vsub.f32 %v570, %v702
  %v725 = vsub.f32 %v573, %v705
  %v726 = vsub.f32 %v611, %v708
  %v727 = vsub.f32 %v614, %v711
  %v728 = vsub.f32 %v652, %v714
  %v729 = vsub.f32 %v655, %v717
  %v730 = vsub.f32 %v693, %v720
  %v731 = vsub.f32 %v696, %v723
  %v732 = vmul.f32 %v724, 1.442695
  %v733 = vpow.pop %v732
  %v734 = vmul.f32 %v725, 1.442695
  %v735 = vpow.pop %v734
  %v736 = vmul.f32 %v726, 1.442695
  %v737 = vpow.pop %v736
  %v738 = vmul.f32 %v727, 1.442695
  %v739 = vpow.pop %v738
  %v740 = vmul.f32 %v728, 1.442695
  %v741 = vpow.pop %v740
  %v742 = vmul.f32 %v729, 1.442695
  %v743 = vpow.pop %v742
  %v744 = vmul.f32 %v730, 1.442695
  %v745 = vpow.pop %v744
  %v746 = vmul.f32 %v731, 1.442695
  %v747 = vpow.pop %v746
  %v748 = vsel %vm699, %v733, 0.0
  %749 = vadd.xlane.f32.xlu0 %v748
  %v750 = vpop.xlane.xlu0 %749
  %v751 = vsel %vm699, %v735, 0.0
  %752 = vadd.xlane.f32.xlu0 %v751
  %v753 = vpop.xlane.xlu0 %752
  %v754 = vsel %vm699, %v737, 0.0
  %755 = vadd.xlane.f32.xlu0 %v754
  %v756 = vpop.xlane.xlu0 %755
  %v757 = vsel %vm699, %v739, 0.0
  %758 = vadd.xlane.f32.xlu0 %v757
  %v759 = vpop.xlane.xlu0 %758
  %v760 = vsel %vm699, %v741, 0.0
  %761 = vadd.xlane.f32.xlu0 %v760
  %v762 = vpop.xlane.xlu0 %761
  %v763 = vsel %vm699, %v743, 0.0
  %764 = vadd.xlane.f32.xlu0 %v763
  %v765 = vpop.xlane.xlu0 %764
  %v766 = vsel %vm699, %v745, 0.0
  %767 = vadd.xlane.f32.xlu0 %v766
  %v768 = vpop.xlane.xlu0 %767
  %v769 = vsel %vm699, %v747, 0.0
  %770 = vadd.xlane.f32.xlu0 %v769
  %v771 = vpop.xlane.xlu0 %770
  %v772 = vpack.c.bf16 %v735, %v733
  %v773 = vpack.c.bf16 %v739, %v737
  %v774 = vpack.c.bf16 %v743, %v741
  %v775 = vpack.c.bf16 %v747, %v745
  %v777 = vsel %vm699, %v772, 0
  %779 = vmatprep.subr.bf16.mxu0 0
  %780 = vmatpush1.bf16.msra.mxu0 0
  %781 = vmatprep.subr.bf16.mxu0 0
  %782 = vmatpush1.bf16.msra.mxu0 0
  %783 = vmatprep.subr.bf16.mxu0 0
  %784 = vmatpush1.bf16.msra.mxu0 0
  %785 = vmatprep.subr.bf16.mxu0 0
  %786 = vmatpush1.bf16.msra.mxu0 0
  %787 = vmatprep.subr.bf16.mxu0 0
  %788 = vmatpush1.bf16.msra.mxu0 0
  %789 = vmatprep.subr.bf16.mxu0 0
  %790 = vmatpush1.bf16.msra.mxu0 0
  %791 = vmatprep.subr.bf16.mxu0 0
  %792 = vmatpush1.bf16.msra.mxu0 0
  %793 = vmatprep.subr.bf16.mxu0 0
  %794 = vmatpush1.bf16.msra.mxu0 %v531
  %795 = vmatprep.subr.bf16.mxu0 0
  %796 = vmatpush2.bf16.msra.mxu0 0
  %797 = vmatprep.subr.bf16.mxu0 0
  %798 = vmatpush2.bf16.msra.mxu0 0
  %799 = vmatprep.subr.bf16.mxu0 0
  %800 = vmatpush2.bf16.msra.mxu0 0
  %801 = vmatprep.subr.bf16.mxu0 0
  %802 = vmatpush2.bf16.msra.mxu0 0
  %803 = vmatprep.subr.bf16.mxu0 0
  %804 = vmatpush2.bf16.msra.mxu0 0
  %805 = vmatprep.subr.bf16.mxu0 0
  %806 = vmatpush2.bf16.msra.mxu0 0
  %807 = vmatprep.subr.bf16.mxu0 0
  %808 = vmatpush2.bf16.msra.mxu0 0
  %809 = vmatprep.subr.bf16.mxu0 0
  %810 = vmatpush2.bf16.msra.mxu0 0
  %811 = vmatprep.mubr.bf16.mxu0 0
  %812 = vmatmul.mubr.bf16.gmra.mxu0 %v777
  %v813 = vpop.f32.mrf.mxu0
  %v814 = vadd.f32 0.0, %v813
  %v815 = vpop.f32.mrf.mxu0
  %v816 = vpop.f32.mrf.mxu0
  %v817 = vadd.f32 0.0, %v816
  %v818 = vpop.f32.mrf.mxu0
  %819 = vdwg.mxu0
  %v821 = vsel %vm699, %v773, 0
  %823 = vmatprep.subr.bf16.mxu0 0
  %824 = vmatpush1.bf16.msra.mxu0 0
  %825 = vmatprep.subr.bf16.mxu0 0
  %826 = vmatpush1.bf16.msra.mxu0 0
  %827 = vmatprep.subr.bf16.mxu0 0
  %828 = vmatpush1.bf16.msra.mxu0 0
  %829 = vmatprep.subr.bf16.mxu0 0
  %830 = vmatpush1.bf16.msra.mxu0 0
  %831 = vmatprep.subr.bf16.mxu0 0
  %832 = vmatpush1.bf16.msra.mxu0 0
  %833 = vmatprep.subr.bf16.mxu0 0
  %834 = vmatpush1.bf16.msra.mxu0 0
  %835 = vmatprep.subr.bf16.mxu0 0
  %836 = vmatpush1.bf16.msra.mxu0 0
  %837 = vmatprep.subr.bf16.mxu0 0
  %838 = vmatpush1.bf16.msra.mxu0 %v532
  %839 = vmatprep.subr.bf16.mxu0 0
  %840 = vmatpush2.bf16.msra.mxu0 0
  %841 = vmatprep.subr.bf16.mxu0 0
  %842 = vmatpush2.bf16.msra.mxu0 0
  %843 = vmatprep.subr.bf16.mxu0 0
  %844 = vmatpush2.bf16.msra.mxu0 0
  %845 = vmatprep.subr.bf16.mxu0 0
  %846 = vmatpush2.bf16.msra.mxu0 0
  %847 = vmatprep.subr.bf16.mxu0 0
  %848 = vmatpush2.bf16.msra.mxu0 0
  %849 = vmatprep.subr.bf16.mxu0 0
  %850 = vmatpush2.bf16.msra.mxu0 0
  %851 = vmatprep.subr.bf16.mxu0 0
  %852 = vmatpush2.bf16.msra.mxu0 0
  %853 = vmatprep.subr.bf16.mxu0 0
  %854 = vmatpush2.bf16.msra.mxu0 0
  %855 = vmatprep.mubr.bf16.mxu0 0
  %856 = vmatmul.mubr.bf16.gmra.mxu0 %v821
  %v857 = vpop.f32.mrf.mxu0
  %v858 = vadd.f32 0.0, %v857
  %v859 = vpop.f32.mrf.mxu0
  %v860 = vpop.f32.mrf.mxu0
  %v861 = vadd.f32 0.0, %v860
  %v862 = vpop.f32.mrf.mxu0
  %863 = vdwg.mxu0
  %v865 = vsel %vm699, %v774, 0
  %867 = vmatprep.subr.bf16.mxu0 0
  %868 = vmatpush1.bf16.msra.mxu0 0
  %869 = vmatprep.subr.bf16.mxu0 0
  %870 = vmatpush1.bf16.msra.mxu0 0
  %871 = vmatprep.subr.bf16.mxu0 0
  %872 = vmatpush1.bf16.msra.mxu0 0
  %873 = vmatprep.subr.bf16.mxu0 0
  %874 = vmatpush1.bf16.msra.mxu0 0
  %875 = vmatprep.subr.bf16.mxu0 0
  %876 = vmatpush1.bf16.msra.mxu0 0
  %877 = vmatprep.subr.bf16.mxu0 0
  %878 = vmatpush1.bf16.msra.mxu0 0
  %879 = vmatprep.subr.bf16.mxu0 0
  %880 = vmatpush1.bf16.msra.mxu0 0
  %881 = vmatprep.subr.bf16.mxu0 0
  %882 = vmatpush1.bf16.msra.mxu0 %v533
  %883 = vmatprep.subr.bf16.mxu0 0
  %884 = vmatpush2.bf16.msra.mxu0 0
  %885 = vmatprep.subr.bf16.mxu0 0
  %886 = vmatpush2.bf16.msra.mxu0 0
  %887 = vmatprep.subr.bf16.mxu0 0
  %888 = vmatpush2.bf16.msra.mxu0 0
  %889 = vmatprep.subr.bf16.mxu0 0
  %890 = vmatpush2.bf16.msra.mxu0 0
  %891 = vmatprep.subr.bf16.mxu0 0
  %892 = vmatpush2.bf16.msra.mxu0 0
  %893 = vmatprep.subr.bf16.mxu0 0
  %894 = vmatpush2.bf16.msra.mxu0 0
  %895 = vmatprep.subr.bf16.mxu0 0
  %896 = vmatpush2.bf16.msra.mxu0 0
  %897 = vmatprep.subr.bf16.mxu0 0
  %898 = vmatpush2.bf16.msra.mxu0 0
  %899 = vmatprep.mubr.bf16.mxu0 0
  %900 = vmatmul.mubr.bf16.gmra.mxu0 %v865
  %v901 = vpop.f32.mrf.mxu0
  %v902 = vadd.f32 0.0, %v901
  %v903 = vpop.f32.mrf.mxu0
  %v904 = vpop.f32.mrf.mxu0
  %v905 = vadd.f32 0.0, %v904
  %v906 = vpop.f32.mrf.mxu0
  %907 = vdwg.mxu0
  %v909 = vsel %vm699, %v775, 0
  %911 = vmatprep.subr.bf16.mxu0 0
  %912 = vmatpush1.bf16.msra.mxu0 0
  %913 = vmatprep.subr.bf16.mxu0 0
  %914 = vmatpush1.bf16.msra.mxu0 0
  %915 = vmatprep.subr.bf16.mxu0 0
  %916 = vmatpush1.bf16.msra.mxu0 0
  %917 = vmatprep.subr.bf16.mxu0 0
  %918 = vmatpush1.bf16.msra.mxu0 0
  %919 = vmatprep.subr.bf16.mxu0 0
  %920 = vmatpush1.bf16.msra.mxu0 0
  %921 = vmatprep.subr.bf16.mxu0 0
  %922 = vmatpush1.bf16.msra.mxu0 0
  %923 = vmatprep.subr.bf16.mxu0 0
  %924 = vmatpush1.bf16.msra.mxu0 0
  %925 = vmatprep.subr.bf16.mxu0 0
  %926 = vmatpush1.bf16.msra.mxu0 %v534
  %927 = vmatprep.subr.bf16.mxu0 0
  %928 = vmatpush2.bf16.msra.mxu0 0
  %929 = vmatprep.subr.bf16.mxu0 0
  %930 = vmatpush2.bf16.msra.mxu0 0
  %931 = vmatprep.subr.bf16.mxu0 0
  %932 = vmatpush2.bf16.msra.mxu0 0
  %933 = vmatprep.subr.bf16.mxu0 0
  %934 = vmatpush2.bf16.msra.mxu0 0
  %935 = vmatprep.subr.bf16.mxu0 0
  %936 = vmatpush2.bf16.msra.mxu0 0
  %937 = vmatprep.subr.bf16.mxu0 0
  %938 = vmatpush2.bf16.msra.mxu0 0
  %939 = vmatprep.subr.bf16.mxu0 0
  %940 = vmatpush2.bf16.msra.mxu0 0
  %941 = vmatprep.subr.bf16.mxu0 0
  %942 = vmatpush2.bf16.msra.mxu0 0
  %943 = vmatprep.mubr.bf16.mxu0 0
  %944 = vmatmul.mubr.bf16.gmra.mxu0 %v909
  %v945 = vpop.f32.mrf.mxu0
  %v946 = vadd.f32 0.0, %v945
  %v947 = vpop.f32.mrf.mxu0
  %v948 = vpop.f32.mrf.mxu0
  %v949 = vadd.f32 0.0, %v948
  %v950 = vpop.f32.mrf.mxu0
  %951 = vdwg.mxu0
  %v952 = vrcp.pop %v750
  %v953 = vrcp.pop %v753
  %v954 = vrcp.pop %v756
  %v955 = vrcp.pop %v759
  %v956 = vrcp.pop %v762
  %v957 = vrcp.pop %v765
  %v958 = vrcp.pop %v768
  %v959 = vrcp.pop %v771
  %v960 = vmul.f32 %v814, %v952
  %v961 = vmul.f32 %v817, %v953
  %v962 = vmul.f32 %v858, %v954
  %v963 = vmul.f32 %v861, %v955
  %v964 = vmul.f32 %v902, %v956
  %v965 = vmul.f32 %v905, %v957
  %v966 = vmul.f32 %v946, %v958
  %v967 = vmul.f32 %v949, %v959
  %v968 = vpack.c.bf16 %v961, %v960
  %v969 = vpack.c.bf16 %v963, %v962
  %v970 = vpack.c.bf16 %v965, %v964
  %v971 = vpack.c.bf16 %v967, %v966
  %v972 = vld [vmem:[%s3] sm:$0xff]
  %v973 = vld [vmem:[%s3 + $0x8] sm:$0xff]
  %v974 = vld [vmem:[%s3 + $0x10] sm:$0xff]
  %v975 = vld [vmem:[%s3 + $0x18] sm:$0xff]
  %v976 = vld [vmem:[%s3 + $0x20] sm:$0xff]
  %v977 = vld [vmem:[%s3 + $0x28] sm:$0xff]
  %v978 = vld [vmem:[%s3 + $0x30] sm:$0xff]
  %v979 = vld [vmem:[%s3 + $0x38] sm:$0xff]
  %v980 = vld [vmem:[%s3 + $0x40] sm:$0xff]
  %v981 = vld [vmem:[%s3 + $0x48] sm:$0xff]
  %v982 = vld [vmem:[%s3 + $0x50] sm:$0xff]
  %v983 = vld [vmem:[%s3 + $0x58] sm:$0xff]
  %v984 = vld [vmem:[%s3 + $0x60] sm:$0xff]
  %v985 = vld [vmem:[%s3 + $0x68] sm:$0xff]
  %v986 = vld [vmem:[%s3 + $0x70] sm:$0xff]
  %v987 = vld [vmem:[%s3 + $0x78] sm:$0xff]
  %v988 = vld [vmem:[%s4] sm:$0x3]
  %v990 = vlaneseq
  %v991 = vshrl.u32 %v990, 7
  %v992 = vsub.s32 0, %v991
  %v993 = vrot.slane %v988, %v992
  %v994 = vlaneseq
  %v995 = vshrl.u32 %v994, 7
  %v996 = vsub.s32 1, %v995
  %v997 = vrot.slane %v988, %v996
  %v1016 = vunpack.c.l.b16 %v972
  %v1017 = vunpack.c.h.b16 %v972
  %v1018 = vunpack.c.l.b16 %v973
  %v1019 = vunpack.c.h.b16 %v973
  %v1020 = vunpack.c.l.b16 %v974
  %v1021 = vunpack.c.h.b16 %v974
  %v1022 = vunpack.c.l.b16 %v975
  %v1023 = vunpack.c.h.b16 %v975
  %v1024 = vunpack.c.l.b16 %v976
  %v1025 = vunpack.c.h.b16 %v976
  %v1026 = vunpack.c.l.b16 %v977
  %v1027 = vunpack.c.h.b16 %v977
  %v1028 = vunpack.c.l.b16 %v978
  %v1029 = vunpack.c.h.b16 %v978
  %v1030 = vunpack.c.l.b16 %v979
  %v1031 = vunpack.c.h.b16 %v979
  %v1032 = vunpack.c.l.b16 %v980
  %v1033 = vunpack.c.h.b16 %v980
  %v1034 = vunpack.c.l.b16 %v981
  %v1035 = vunpack.c.h.b16 %v981
  %v1036 = vunpack.c.l.b16 %v982
  %v1037 = vunpack.c.h.b16 %v982
  %v1038 = vunpack.c.l.b16 %v983
  %v1039 = vunpack.c.h.b16 %v983
  %v1040 = vunpack.c.l.b16 %v984
  %v1041 = vunpack.c.h.b16 %v984
  %v1042 = vunpack.c.l.b16 %v985
  %v1043 = vunpack.c.h.b16 %v985
  %v1044 = vunpack.c.l.b16 %v986
  %v1045 = vunpack.c.h.b16 %v986
  %v1046 = vunpack.c.l.b16 %v987
  %v1047 = vunpack.c.h.b16 %v987
  %v1048 = vpack.c.b16 %v1018, %v1016
  %v1049 = vpack.c.b16 %v1019, %v1017
  %v1050 = vpack.c.b16 %v1022, %v1020
  %v1051 = vpack.c.b16 %v1023, %v1021
  %v1052 = vpack.c.b16 %v1026, %v1024
  %v1053 = vpack.c.b16 %v1027, %v1025
  %v1054 = vpack.c.b16 %v1030, %v1028
  %v1055 = vpack.c.b16 %v1031, %v1029
  %v1056 = vpack.c.b16 %v1034, %v1032
  %v1057 = vpack.c.b16 %v1035, %v1033
  %v1058 = vpack.c.b16 %v1038, %v1036
  %v1059 = vpack.c.b16 %v1039, %v1037
  %v1060 = vpack.c.b16 %v1042, %v1040
  %v1061 = vpack.c.b16 %v1043, %v1041
  %v1062 = vpack.c.b16 %v1046, %v1044
  %v1063 = vpack.c.b16 %v1047, %v1045
  %1080 = vmatprep.subr.bf16.mxu0 %v1063
  %1081 = vmatpush1.bf16.msra.mxu0 %v1062
  %1082 = vmatprep.subr.bf16.mxu0 %v1061
  %1083 = vmatpush1.bf16.msra.mxu0 %v1060
  %1084 = vmatprep.subr.bf16.mxu0 %v1059
  %1085 = vmatpush1.bf16.msra.mxu0 %v1058
  %1086 = vmatprep.subr.bf16.mxu0 %v1057
  %1087 = vmatpush1.bf16.msra.mxu0 %v1056
  %1088 = vmatprep.subr.bf16.mxu0 %v1055
  %1089 = vmatpush1.bf16.msra.mxu0 %v1054
  %1090 = vmatprep.subr.bf16.mxu0 %v1053
  %1091 = vmatpush1.bf16.msra.mxu0 %v1052
  %1092 = vmatprep.subr.bf16.mxu0 %v1051
  %1093 = vmatpush1.bf16.msra.mxu0 %v1050
  %1094 = vmatprep.subr.bf16.mxu0 %v1049
  %1095 = vmatpush1.bf16.msra.mxu0 %v1048
  %1096 = vmatprep.subr.bf16.mxu0 0
  %1097 = vmatpush2.bf16.msra.mxu0 0
  %1098 = vmatprep.subr.bf16.mxu0 0
  %1099 = vmatpush2.bf16.msra.mxu0 0
  %1100 = vmatprep.subr.bf16.mxu0 0
  %1101 = vmatpush2.bf16.msra.mxu0 0
  %1102 = vmatprep.subr.bf16.mxu0 0
  %1103 = vmatpush2.bf16.msra.mxu0 0
  %1104 = vmatprep.subr.bf16.mxu0 0
  %1105 = vmatpush2.bf16.msra.mxu0 0
  %1106 = vmatprep.subr.bf16.mxu0 0
  %1107 = vmatpush2.bf16.msra.mxu0 0
  %1108 = vmatprep.subr.bf16.mxu0 0
  %1109 = vmatpush2.bf16.msra.mxu0 0
  %1110 = vmatprep.subr.bf16.mxu0 0
  %1111 = vmatpush2.bf16.msra.mxu0 0
  %1112 = vmatprep.mubr.bf16.mxu0 0
  %1113 = vmatmul.mubr.bf16.gmra.mxu0 %v968
  %v1114 = vpop.f32.mrf.mxu0
  %v1115 = vadd.f32 %v993, %v1114
  %v1116 = vpop.f32.mrf.mxu0
  %v1117 = vadd.f32 %v997, %v1116
  %v1118 = vpop.f32.mrf.mxu0
  %v1119 = vadd.f32 %v993, %v1118
  %v1120 = vpop.f32.mrf.mxu0
  %v1121 = vadd.f32 %v997, %v1120
  %1122 = vmatprep.mubr.bf16.mxu0 0
  %1123 = vmatmul.mubr.bf16.gmra.mxu0 %v969
  %v1124 = vpop.f32.mrf.mxu0
  %v1125 = vadd.f32 %v993, %v1124
  %v1126 = vpop.f32.mrf.mxu0
  %v1127 = vadd.f32 %v997, %v1126
  %v1128 = vpop.f32.mrf.mxu0
  %v1129 = vadd.f32 %v993, %v1128
  %v1130 = vpop.f32.mrf.mxu0
  %v1131 = vadd.f32 %v997, %v1130
  %1132 = vmatprep.mubr.bf16.mxu0 0
  %1133 = vmatmul.mubr.bf16.gmra.mxu0 %v970
  %v1134 = vpop.f32.mrf.mxu0
  %v1135 = vadd.f32 %v993, %v1134
  %v1136 = vpop.f32.mrf.mxu0
  %v1137 = vadd.f32 %v997, %v1136
  %v1138 = vpop.f32.mrf.mxu0
  %v1139 = vadd.f32 %v993, %v1138
  %v1140 = vpop.f32.mrf.mxu0
  %v1141 = vadd.f32 %v997, %v1140
  %1142 = vmatprep.mubr.bf16.mxu0 0
  %1143 = vmatmul.mubr.bf16.gmra.mxu0 %v971
  %v1144 = vpop.f32.mrf.mxu0
  %v1145 = vadd.f32 %v993, %v1144
  %v1146 = vpop.f32.mrf.mxu0
  %v1147 = vadd.f32 %v997, %v1146
  %v1148 = vpop.f32.mrf.mxu0
  %v1149 = vadd.f32 %v993, %v1148
  %v1150 = vpop.f32.mrf.mxu0
  %v1151 = vadd.f32 %v997, %v1150
  %1152 = vdwg.mxu0
  %v1153 = vpack.c.bf16 %v1119, %v1115
  %v1154 = vpack.c.bf16 %v1121, %v1117
  %v1155 = vpack.c.bf16 %v1129, %v1125
  %v1156 = vpack.c.bf16 %v1131, %v1127
  %v1157 = vpack.c.bf16 %v1139, %v1135
  %v1158 = vpack.c.bf16 %v1141, %v1137
  %v1159 = vpack.c.bf16 %v1149, %v1145
  %v1160 = vpack.c.bf16 %v1151, %v1147
  %v1169 = vunpack.c.l.b16 %v1153
  %v1170 = vunpack.c.l.b16 %v1154
  %v1171 = vunpack.c.h.b16 %v1153
  %v1172 = vunpack.c.h.b16 %v1154
  %v1173 = vunpack.c.l.b16 %v1155
  %v1174 = vunpack.c.l.b16 %v1156
  %v1175 = vunpack.c.h.b16 %v1155
  %v1176 = vunpack.c.h.b16 %v1156
  %v1177 = vunpack.c.l.b16 %v1157
  %v1178 = vunpack.c.l.b16 %v1158
  %v1179 = vunpack.c.h.b16 %v1157
  %v1180 = vunpack.c.h.b16 %v1158
  %v1181 = vunpack.c.l.b16 %v1159
  %v1182 = vunpack.c.l.b16 %v1160
  %v1183 = vunpack.c.h.b16 %v1159
  %v1184 = vunpack.c.h.b16 %v1160
  %v1185 = vpack.c.b16 %v1170, %v1169
  %v1186 = vpack.c.b16 %v1172, %v1171
  %v1187 = vpack.c.b16 %v1174, %v1173
  %v1188 = vpack.c.b16 %v1176, %v1175
  %v1189 = vpack.c.b16 %v1178, %v1177
  %v1190 = vpack.c.b16 %v1180, %v1179
  %v1191 = vpack.c.b16 %v1182, %v1181
  %v1192 = vpack.c.b16 %v1184, %v1183
  %1201 = vst [vmem:[%s5] sm:$0xff] %v1185
  %1202 = vst [vmem:[%s5 + $0x8] sm:$0xff] %v1186
  %1203 = vst [vmem:[%s5 + $0x10] sm:$0xff] %v1187
  %1204 = vst [vmem:[%s5 + $0x18] sm:$0xff] %v1188
  %1205 = vst [vmem:[%s5 + $0x20] sm:$0xff] %v1189
  %1206 = vst [vmem:[%s5 + $0x28] sm:$0xff] %v1190
  %1207 = vst [vmem:[%s5 + $0x30] sm:$0xff] %v1191
  %1208 = vst [vmem:[%s5 + $0x38] sm:$0xff] %v1192
  %v1209 = vadd.f32 %v1115, %v1119
  %v1210 = vadd.f32 %v1209, %v1125
  %v1211 = vadd.f32 %v1210, %v1129
  %v1212 = vadd.f32 %v1211, %v1135
  %v1213 = vadd.f32 %v1212, %v1139
  %v1214 = vadd.f32 %v1213, %v1145
  %v1215 = vadd.f32 %v1214, %v1149
  %v1216 = vrot.slane %v1215, 4
  %v1217 = vadd.f32 %v1215, %v1216
  %v1218 = vrot.slane %v1217, 2
  %v1219 = vadd.f32 %v1217, %v1218
  %v1220 = vrot.slane %v1219, 1
  %v1221 = vadd.f32 %v1219, %v1220
  %v1222 = vadd.f32 %v1117, %v1121
  %v1223 = vadd.f32 %v1222, %v1127
  %v1224 = vadd.f32 %v1223, %v1131
  %v1225 = vadd.f32 %v1224, %v1137
  %v1226 = vadd.f32 %v1225, %v1141
  %v1227 = vadd.f32 %v1226, %v1147
  %v1228 = vadd.f32 %v1227, %v1151
  %v1229 = vrot.slane %v1228, 4
  %v1230 = vadd.f32 %v1228, %v1229
  %v1231 = vrot.slane %v1230, 2
  %v1232 = vadd.f32 %v1230, %v1231
  %v1233 = vrot.slane %v1232, 1
  %v1234 = vadd.f32 %v1232, %v1233
  %v1237 = vcombine.low %v1221, %v1234
  %v1239 = vunpack.c.l.s4 1966171168
  %v1240 = vunpack.c.0.s8 %v1239
  %v1241 = vlaneseq
  %v1242 = vshrl.u32 %v1241, 7
  %v1243 = vsub.s32 %v1240, %v1242
  %v1244 = vrot.slane %v1237, %v1243
  %v1246 = vunpack.c.l.s4 1966171168
  %v1247 = vunpack.c.0.s8 %v1246
  %v1248 = vlaneseq
  %v1249 = vshrl.u32 %v1248, 7
  %v1250 = vsub.s32 %v1247, %v1249
  %v1251 = vrot.slane %v1244, %v1250
  %v1253 = vlaneseq
  %vm1254 = vcmp.ge.s32.totalorder %v1253, 0
  %vm1255 = vcmp.lt.s32.totalorder %v1253, 256
  %vm1256 = vmand %vm1254, %vm1255
  %1257 = vst.msk [vmem:[%s6] sm:$0x3] %vm1256, %v1251
  %v1258 = vmul.f32 %v1115, %v1115
  %v1259 = vmul.f32 %v1117, %v1117
  %v1260 = vmul.f32 %v1119, %v1119
  %v1261 = vmul.f32 %v1121, %v1121
  %v1262 = vmul.f32 %v1125, %v1125
  %v1263 = vmul.f32 %v1127, %v1127
  %v1264 = vmul.f32 %v1129, %v1129
  %v1265 = vmul.f32 %v1131, %v1131
  %v1266 = vmul.f32 %v1135, %v1135
  %v1267 = vmul.f32 %v1137, %v1137
  %v1268 = vmul.f32 %v1139, %v1139
  %v1269 = vmul.f32 %v1141, %v1141
  %v1270 = vmul.f32 %v1145, %v1145
  %v1271 = vmul.f32 %v1147, %v1147
  %v1272 = vmul.f32 %v1149, %v1149
  %v1273 = vmul.f32 %v1151, %v1151
  %v1274 = vadd.f32 %v1258, %v1260
  %v1275 = vadd.f32 %v1274, %v1262
  %v1276 = vadd.f32 %v1275, %v1264
  %v1277 = vadd.f32 %v1276, %v1266
  %v1278 = vadd.f32 %v1277, %v1268
  %v1279 = vadd.f32 %v1278, %v1270
  %v1280 = vadd.f32 %v1279, %v1272
  %v1281 = vrot.slane %v1280, 4
  %v1282 = vadd.f32 %v1280, %v1281
  %v1283 = vrot.slane %v1282, 2
  %v1284 = vadd.f32 %v1282, %v1283
  %v1285 = vrot.slane %v1284, 1
  %v1286 = vadd.f32 %v1284, %v1285
  %v1287 = vadd.f32 %v1259, %v1261
  %v1288 = vadd.f32 %v1287, %v1263
  %v1289 = vadd.f32 %v1288, %v1265
  %v1290 = vadd.f32 %v1289, %v1267
  %v1291 = vadd.f32 %v1290, %v1269
  %v1292 = vadd.f32 %v1291, %v1271
  %v1293 = vadd.f32 %v1292, %v1273
  %v1294 = vrot.slane %v1293, 4
  %v1295 = vadd.f32 %v1293, %v1294
  %v1296 = vrot.slane %v1295, 2
  %v1297 = vadd.f32 %v1295, %v1296
  %v1298 = vrot.slane %v1297, 1
  %v1299 = vadd.f32 %v1297, %v1298
  %v1302 = vcombine.low %v1286, %v1299
  %v1304 = vunpack.c.l.s4 1966171168
  %v1305 = vunpack.c.0.s8 %v1304
  %v1306 = vlaneseq
  %v1307 = vshrl.u32 %v1306, 7
  %v1308 = vsub.s32 %v1305, %v1307
  %v1309 = vrot.slane %v1302, %v1308
  %v1311 = vunpack.c.l.s4 1966171168
  %v1312 = vunpack.c.0.s8 %v1311
  %v1313 = vlaneseq
  %v1314 = vshrl.u32 %v1313, 7
  %v1315 = vsub.s32 %v1312, %v1314
  %v1316 = vrot.slane %v1309, %v1315
  %1318 = vst.msk [vmem:[%s7] sm:$0x3] %vm1256, %v1316
  // Predicated region
  $region22: #{nonlocal_block.2} parent=0 // pred_check
    _
  $region23: #{nonlocal_block.2} parent=0 // pred_check_branch
    %1320 = sbr.rel (0) target = $region25
  $region24: #{nonlocal_block.2} parent=0 // pred_region
    _
  $region25: #{nonlocal_block.2} parent=0 // pred_fallthru
    _
  // Predicated region
  $region26: #{nonlocal_block.2} parent=0 // pred_check
    _
  $region27: #{nonlocal_block.2} parent=0 // pred_check_branch
    %1322 = sbr.rel (0) target = $region29
  $region28: #{nonlocal_block.2} parent=0 // pred_region
    _
  $region29: #{nonlocal_block.2} parent=0 // pred_fallthru
    _
  // Predicated region
  $region30: #{nonlocal_block.2} parent=0 // pred_check
    _
  $region31: #{nonlocal_block.2} parent=0 // pred_check_branch
    %1324 = sbr.rel (0) target = $region33
  $region32: #{nonlocal_block.2} parent=0 // pred_region
    _
  $region33: #{nonlocal_block.2} parent=0 // pred_fallthru
    _
  // Predicated region
  $region34: #{nonlocal_block.2} parent=0 // pred_check
    _
  $region35: #{nonlocal_block.2} parent=0 // pred_check_branch
    %1326 = sbr.rel (0) target = $region37
  $region36: #{nonlocal_block.2} parent=0 // pred_region
    _
  $region37: #{nonlocal_block.2} parent=0 // pred_fallthru
    _
  // Predicated region
  $region38: #{nonlocal_block.2} parent=0 // pred_check
    _
  $region39: #{nonlocal_block.2} parent=0 // pred_check_branch
    %1328 = sbr.rel (0) target = $region41
  $region40: #{nonlocal_block.2} parent=0 // pred_region
    _
  $region41: #{nonlocal_block.2} parent=0 // pred_fallthru
    _
  // Predicated region
  $region42: #{nonlocal_block.2} parent=0 // pred_check
    _
  $region43: #{nonlocal_block.2} parent=0 // pred_check_branch
    %1330 = sbr.rel (0) target = $region45
  $region44: #{nonlocal_block.2} parent=0 // pred_region
    _
  $region45: #{nonlocal_block.2} parent=0 // pred_fallthru
    _

</llo_original>
